<compile_context>
chip_gen: v7x
topology: tpu7x:2x2x1
jax: 0.10.0
libtpu: 0.0.40
codegen_flags: <defaults>
</compile_context>

<pallas_src>
import jax
import jax.numpy as jnp
from jax import lax
from jax.experimental import pallas as pl
from jax.experimental.pallas import tpu as pltpu

L2_EPS = 1e-12
BN_EPS = 1e-5
LEAKY_SLOPE = 0.01  # nn.LeakyReLU default


def _round_up(v, m):
    return (v + m - 1) // m * m


def _vmem_capacity_bytes():
    """Best-effort query of per-core VMEM; conservative 64 MiB (v7x) fallback."""
    try:
        info = pltpu.get_tpu_info()
        for name in ("vmem_capacity_bytes", "vmem_bytes", "vmem_size_bytes"):
            v = getattr(info, name, None)
            if v:
                return int(v)
    except Exception:
        pass
    return 64 << 20


def _fused_mlp_kernel(x_ref, w1_ref, b1_ref, w2_ref, b2_ref, w3_ref, b3_ref, out_ref):
    """One batch tile: (Linear1 || L2-norm) -> scale+bias+LeakyReLU -> Linear2 -> Linear3."""
    x = x_ref[...]  # bf16 (tile_b, F)

    # Layer 1 matmul is issued first and does NOT depend on the row norm, so the
    # MXU streams x while the XLU reduction / EUP rsqrt run in their own slots.
    h1 = jnp.dot(x, w1_ref[...], preferred_element_type=jnp.float32)

    # F.normalize(x): x / max(||x||_2, 1e-12).  Per-row scalar, so it commutes
    # with the matmul:  (x*inv) @ W1 == inv * (x @ W1).
    xf = x.astype(jnp.float32)
    sq = jnp.sum(xf * xf, axis=-1, keepdims=True)
    inv = lax.rsqrt(jnp.maximum(sq, L2_EPS * L2_EPS))  # == 1 / max(||x||, eps)

    # Layer 1: folded eval-mode BatchNorm bias + LeakyReLU.  Dropout = identity.
    h1 = h1 * inv + b1_ref[...]
    h1 = jnp.where(h1 > 0, h1, LEAKY_SLOPE * h1)

    # Layer 2: Linear + (folded) BatchNorm + LeakyReLU.
    h2 = jnp.dot(h1.astype(jnp.bfloat16), w2_ref[...],
                 preferred_element_type=jnp.float32) + b2_ref[...]
    h2 = jnp.where(h2 > 0, h2, LEAKY_SLOPE * h2)

    # Final projection; W3/b3/out are zero-padded to 128 lanes for dense stores.
    out = jnp.dot(h2.astype(jnp.bfloat16), w3_ref[...],
                  preferred_element_type=jnp.float32) + b3_ref[...]
    out_ref[...] = out.astype(out_ref.dtype)


def fold_bn_and_pack(params):
    """Fold eval-mode BatchNorm1d + Linear bias into the weights, cast weights to bf16."""
    def fold(wt, b, gamma, beta, mean, var):
        scale = gamma / jnp.sqrt(var + BN_EPS)                 # (1, out)
        w_f = (wt * scale).astype(jnp.bfloat16)                # (in, out)
        b_f = ((b - mean) * scale + beta).astype(jnp.float32)  # (1, out)
        return w_f, b_f

    w1, b1 = fold(params["w1t"], params["b1"], params["g1"], params["be1"],
                  params["m1"], params["v1"])
    w2, b2 = fold(params["w2t"], params["b2"], params["g2"], params["be2"],
                  params["m2"], params["v2"])
    return {
        "w1": w1, "b1": b1,
        "w2": w2, "b2": b2,
        "w3": params["w3t"].astype(jnp.bfloat16),
        "b3": params["b3"].astype(jnp.float32),
    }


def resnet_features_lc(x, packed, *, tile_b=None):
    """Batch-tiled fused forward pass with per-generation tile / VMEM selection."""
    B, F = x.shape
    I1 = packed["w1"].shape[1]
    I2 = packed["w2"].shape[1]
    T = packed["w3"].shape[1]
    T_pad = max(128, _round_up(T, 128))  # lane-dense output head

    vmem_hw = _vmem_capacity_bytes()
    big_vmem = vmem_hw >= (100 << 20)    # v5e/v6e: 128 MiB; v7x: 64 MiB per TC

    # Tile selection: bigger tiles on 128-MiB chips to amortize the ~0.35 us
    # per-step pipeline overhead; on v7x keep >=2 grid steps so both TCs work.
    if tile_b is None:
        tile_b = 512 if big_vmem else 256
    if not big_vmem and B > 8:
        tile_b = min(tile_b, _round_up((B + 1) // 2, 8))
    tile_b = max(8, _round_up(min(tile_b, _round_up(B, 8)), 8))

    # x streamed as bf16: halves the only large per-step HBM DMA (v6e robustness)
    # and the x double-buffer VMEM.  Small, documented precision change to the norm.
    x = x.astype(jnp.bfloat16)
    b_pad = _round_up(B, tile_b)
    if b_pad != B:
        x = jnp.pad(x, ((0, b_pad - B), (0, 0)))
    grid = (b_pad // tile_b,)

    # Pad the 2-wide head to 128 lanes (zero columns -> identical first T outputs).
    w3p = jnp.pad(packed["w3"], ((0, 0), (0, T_pad - T)))
    b3p = jnp.pad(packed["b3"], ((0, 0), (0, T_pad - T)))
    args = (x, packed["w1"], packed["b1"], packed["w2"], packed["b2"], w3p, b3p)
    param_bytes = sum(int(p.size) * p.dtype.itemsize for p in args[1:])

    def run(use_buffered):
        kw = {}
        if use_buffered and hasattr(pl, "Buffered"):
            kw = dict(pipeline_mode=pl.Buffered(1))  # single resident weight copy
        const2d = lambda i: (0, 0)
        in_specs = [
            pl.BlockSpec((tile_b, F), lambda i: (i, 0)),
            pl.BlockSpec((F, I1), const2d, **kw),
            pl.BlockSpec((1, I1), const2d, **kw),
            pl.BlockSpec((I1, I2), const2d, **kw),
            pl.BlockSpec((1, I2), const2d, **kw),
            pl.BlockSpec((I2, T_pad), const2d, **kw),
            pl.BlockSpec((1, T_pad), const2d, **kw),
        ]
        out_specs = pl.BlockSpec((tile_b, T_pad), lambda i: (i, 0))

        # Explicit VMEM budget: resident params (1 or 2 buffers), double-buffered
        # bf16 x tile + f32 out tile, activation scratch, margin; per-gen cap.
        weight_bufs = 1 if use_buffered else 2
        x_tile_bytes = tile_b * F * 2
        out_tile_bytes = tile_b * T_pad * 4
        act_bytes = tile_b * max(F, I1, I2, T_pad) * 4 * 4
        budget = (weight_bufs * param_bytes + 2 * (x_tile_bytes + out_tile_bytes)
                  + act_bytes + (8 << 20))
        cap = (96 << 20) if big_vmem else (48 << 20)
        budget = int(min(max(budget, 16 << 20), cap))

        return pl.pallas_call(
            _fused_mlp_kernel,
            out_shape=jax.ShapeDtypeStruct((b_pad, T_pad), jnp.float32),
            grid=grid,
            in_specs=in_specs,
            out_specs=out_specs,
            compiler_params=pltpu.CompilerParams(
                dimension_semantics=("parallel",),   # shards batch tiles across TCs on v7x
                vmem_limit_bytes=budget,
            ),
        )(*args)

    try:
        out = run(True)
    except Exception:
        # Portability fallback: some jax versions reject Buffered(1) on inputs.
        out = run(False)
    return out[:B, :T]


def init_params(key, in_features, inter1, inter2, target_dim):
    """Parameter init matching the PyTorch module (xavier_normal_ weights, normal_ biases).

    Fresh-module BatchNorm defaults are gamma=1, beta=0, mean=0, var=1; we use
    non-trivial random values here so the test actually exercises BN folding.
    """
    ks = jax.random.split(key, 14)

    def xavier_normal(k, fan_in, fan_out):
        std = (2.0 / (fan_in + fan_out)) ** 0.5
        w = std * jax.random.normal(k, (fan_out, fan_in), dtype=jnp.float32)  # (out, in)
        return w.T  # (in, out) for row-major x @ Wt

    def bias_normal(k, dim):
        return jax.random.normal(k, (1, dim), dtype=jnp.float32)

    params = {
        "w1t": xavier_normal(ks[0], in_features, inter1),
        "b1": bias_normal(ks[1], inter1),
        "w2t": xavier_normal(ks[2], inter1, inter2),
        "b2": bias_normal(ks[3], inter2),
        "w3t": xavier_normal(ks[4], inter2, target_dim),
        "b3": bias_normal(ks[5], target_dim),
    }
    for idx, (name, dim) in enumerate((("1", inter1), ("2", inter2))):
        base = 6 + idx * 4
        params["g" + name] = 0.5 + jax.random.uniform(ks[base], (1, dim), dtype=jnp.float32)
        params["be" + name] = 0.1 * jax.random.normal(ks[base + 1], (1, dim), dtype=jnp.float32)
        params["m" + name] = 0.1 * jax.random.normal(ks[base + 2], (1, dim), dtype=jnp.float32)
        params["v" + name] = 0.5 + jax.random.uniform(ks[base + 3], (1, dim), dtype=jnp.float32)
    return params


def reference_forward(x, params):
    """Pure-JAX f32 reference with the original (unfolded) parameters."""
    x = x.astype(jnp.float32)
    norm = jnp.sqrt(jnp.sum(x * x, axis=-1, keepdims=True))
    h = x / jnp.maximum(norm, L2_EPS)

    def bn(h, g, be, m, v):
        return (h - m) * lax.rsqrt(v + BN_EPS) * g + be

    def lrelu(h):
        return jnp.where(h > 0, h, LEAKY_SLOPE * h)

    h = lrelu(bn(h @ params["w1t"] + params["b1"],
                 params["g1"], params["be1"], params["m1"], params["v1"]))
    h = lrelu(bn(h @ params["w2t"] + params["b2"],
                 params["g2"], params["be2"], params["m2"], params["v2"]))
    return h @ params["w3t"] + params["b3"]


if __name__ == "__main__":
    # Small shapes consistent with the module (real module: in=2048, inter=1024, out=2).
    B, IN_FEATURES, INTER1, INTER2, TARGET_DIM = 24, 256, 128, 128, 2

    key = jax.random.PRNGKey(0)
    kx, kp = jax.random.split(key)
    x = jax.random.normal(kx, (B, IN_FEATURES), dtype=jnp.float32)
    params = init_params(kp, IN_FEATURES, INTER1, INTER2, TARGET_DIM)
    packed = fold_bn_and_pack(params)

    # tile_b=8 -> grid of 3 batch tiles, exercising the pipelined/parallel grid.
    out = resnet_features_lc(x, packed, tile_b=8)
    out = jax.block_until_ready(out)

    ref = reference_forward(x, params)
    assert out.shape == (B, TARGET_DIM)
    # bf16 x stream + bf16 matmuls (f32 accumulation) vs f32 reference -> loose tolerance.
    max_diff = float(jnp.max(jnp.abs(out - ref)))
    assert jnp.allclose(out, ref, atol=5e-2, rtol=5e-2), (
        f"mismatch vs pure-JAX reference; max abs diff = {max_diff}")

    # TODO(synk): train-mode Dropout(p=0.5) and batch-statistic BatchNorm1d are not
    # implemented (eval-mode semantics only).
    print("KERNEL_OK")
</pallas_src>

<mosaic_0001>
module attributes {stable_mosaic.version = 11 : i64} {
  func.func @_fused_mlp_kernel(%arg0: i32, %arg1: memref<8x256xbf16, #tpu.memory_space<vmem>>, %arg2: memref<256x128xbf16, #tpu.memory_space<vmem>>, %arg3: memref<1x128xf32, #tpu.memory_space<vmem>>, %arg4: memref<128x128xbf16, #tpu.memory_space<vmem>>, %arg5: memref<1x128xf32, #tpu.memory_space<vmem>>, %arg6: memref<128x128xbf16, #tpu.memory_space<vmem>>, %arg7: memref<1x128xf32, #tpu.memory_space<vmem>>, %arg8: memref<8x128xf32, #tpu.memory_space<vmem>>) attributes {dimension_semantics = [#tpu.dimension_semantics<parallel>], iteration_bounds = array<i64: 3>, scalar_prefetch = 0 : i64, scratch_operands = 0 : i64, tpu.core_type = #tpu.core_type<tc>, window_params = [{transform_indices = @transform_0, window_bounds = array<i64: 8, 256>}, {pipeline_mode = #tpu.pipeline_mode<synchronous>, transform_indices = @transform_1, window_bounds = array<i64: 256, 128>}, {pipeline_mode = #tpu.pipeline_mode<synchronous>, transform_indices = @transform_2, window_bounds = array<i64: 1, 128>}, {pipeline_mode = #tpu.pipeline_mode<synchronous>, transform_indices = @transform_3, window_bounds = array<i64: 128, 128>}, {pipeline_mode = #tpu.pipeline_mode<synchronous>, transform_indices = @transform_4, window_bounds = array<i64: 1, 128>}, {pipeline_mode = #tpu.pipeline_mode<synchronous>, transform_indices = @transform_5, window_bounds = array<i64: 128, 128>}, {pipeline_mode = #tpu.pipeline_mode<synchronous>, transform_indices = @transform_6, window_bounds = array<i64: 1, 128>}, {transform_indices = @transform_7, window_bounds = array<i64: 8, 128>}]} {
    %c0 = arith.constant 0 : index
    %c0_0 = arith.constant 0 : index
    %0 = vector.load %arg1[%c0, %c0_0] : memref<8x256xbf16, #tpu.memory_space<vmem>>, vector<8x256xbf16>
    %c0_1 = arith.constant 0 : index
    %c0_2 = arith.constant 0 : index
    %1 = vector.load %arg2[%c0_1, %c0_2] : memref<256x128xbf16, #tpu.memory_space<vmem>>, vector<256x128xbf16>
    %cst = arith.constant dense<0.000000e+00> : vector<8x128xf32>
    %2 = tpu.matmul %0, %1, %cst {dimension_numbers = #tpu.dot_dimension_numbers<[1], [0], [0], [1], [0, 0, 1, 1], [], []>} : vector<8x256xbf16>, vector<256x128xbf16>, vector<8x128xf32> -> vector<8x128xf32>
    %3 = arith.extf %0 : vector<8x256xbf16> to vector<8x256xf32>
    %4 = arith.mulf %3, %3 : vector<8x256xf32>
    %cst_3 = arith.constant dense<0.000000e+00> : vector<8xf32>
    %5 = vector.multi_reduction <add>, %4, %cst_3 [1] : vector<8x256xf32> to vector<8xf32>
    %6 = vector.shape_cast %5 : vector<8xf32> to vector<8x1xf32>
    %cst_4 = arith.constant 1.000000e-24 : f32
    %7 = vector.broadcast %cst_4 : f32 to vector<8x1xf32>
    %8 = arith.maximumf %6, %7 : vector<8x1xf32>
    %9 = math.rsqrt %8 : vector<8x1xf32>
    %10 = vector.broadcast %9 : vector<8x1xf32> to vector<8x128xf32>
    %11 = arith.mulf %2, %10 : vector<8x128xf32>
    %c0_5 = arith.constant 0 : index
    %c0_6 = arith.constant 0 : index
    %12 = vector.load %arg3[%c0_5, %c0_6] : memref<1x128xf32, #tpu.memory_space<vmem>>, vector<1x128xf32>
    %13 = vector.broadcast %12 : vector<1x128xf32> to vector<8x128xf32>
    %14 = arith.addf %11, %13 : vector<8x128xf32>
    %cst_7 = arith.constant 0.000000e+00 : f32
    %15 = vector.broadcast %cst_7 : f32 to vector<8x128xf32>
    %16 = arith.cmpf ogt, %14, %15 : vector<8x128xf32>
    %cst_8 = arith.constant 0.00999999977 : f32
    %17 = vector.broadcast %cst_8 : f32 to vector<8x128xf32>
    %18 = arith.mulf %17, %14 : vector<8x128xf32>
    %19 = arith.select %16, %14, %18 : vector<8x128xi1>, vector<8x128xf32>
    %20 = arith.truncf %19 : vector<8x128xf32> to vector<8x128xbf16>
    %c0_9 = arith.constant 0 : index
    %c0_10 = arith.constant 0 : index
    %21 = vector.load %arg4[%c0_9, %c0_10] : memref<128x128xbf16, #tpu.memory_space<vmem>>, vector<128x128xbf16>
    %cst_11 = arith.constant dense<0.000000e+00> : vector<8x128xf32>
    %22 = tpu.matmul %20, %21, %cst_11 {dimension_numbers = #tpu.dot_dimension_numbers<[1], [0], [0], [1], [0, 0, 1, 1], [], []>} : vector<8x128xbf16>, vector<128x128xbf16>, vector<8x128xf32> -> vector<8x128xf32>
    %c0_12 = arith.constant 0 : index
    %c0_13 = arith.constant 0 : index
    %23 = vector.load %arg5[%c0_12, %c0_13] : memref<1x128xf32, #tpu.memory_space<vmem>>, vector<1x128xf32>
    %24 = vector.broadcast %23 : vector<1x128xf32> to vector<8x128xf32>
    %25 = arith.addf %22, %24 : vector<8x128xf32>
    %cst_14 = arith.constant 0.000000e+00 : f32
    %26 = vector.broadcast %cst_14 : f32 to vector<8x128xf32>
    %27 = arith.cmpf ogt, %25, %26 : vector<8x128xf32>
    %cst_15 = arith.constant 0.00999999977 : f32
    %28 = vector.broadcast %cst_15 : f32 to vector<8x128xf32>
    %29 = arith.mulf %28, %25 : vector<8x128xf32>
    %30 = arith.select %27, %25, %29 : vector<8x128xi1>, vector<8x128xf32>
    %31 = arith.truncf %30 : vector<8x128xf32> to vector<8x128xbf16>
    %c0_16 = arith.constant 0 : index
    %c0_17 = arith.constant 0 : index
    %32 = vector.load %arg6[%c0_16, %c0_17] : memref<128x128xbf16, #tpu.memory_space<vmem>>, vector<128x128xbf16>
    %cst_18 = arith.constant dense<0.000000e+00> : vector<8x128xf32>
    %33 = tpu.matmul %31, %32, %cst_18 {dimension_numbers = #tpu.dot_dimension_numbers<[1], [0], [0], [1], [0, 0, 1, 1], [], []>} : vector<8x128xbf16>, vector<128x128xbf16>, vector<8x128xf32> -> vector<8x128xf32>
    %c0_19 = arith.constant 0 : index
    %c0_20 = arith.constant 0 : index
    %34 = vector.load %arg7[%c0_19, %c0_20] : memref<1x128xf32, #tpu.memory_space<vmem>>, vector<1x128xf32>
    %35 = vector.broadcast %34 : vector<1x128xf32> to vector<8x128xf32>
    %36 = arith.addf %33, %35 : vector<8x128xf32>
    %c0_21 = arith.constant 0 : index
    %c0_22 = arith.constant 0 : index
    %37 = vector.load %arg8[%c0_21, %c0_22] : memref<8x128xf32, #tpu.memory_space<vmem>>, vector<8x128xf32>
    tpu.vector_store %arg8[%c0_21, %c0_22], %36 {strides = array<i32>} : memref<8x128xf32, #tpu.memory_space<vmem>>, vector<8x128xf32>,
    return
  }
  func.func @transform_0(%arg0: i32) -> (i32, i32) {
    %c0_i32 = arith.constant 0 : i32
    %c0_i32_0 = arith.constant 0 : i32
    return %arg0, %c0_i32 : i32, i32
  }
  func.func @transform_1(%arg0: i32) -> (i32, i32) {
    %c0_i32 = arith.constant 0 : i32
    %c0_i32_0 = arith.constant 0 : i32
    %c0_i32_1 = arith.constant 0 : i32
    return %c0_i32, %c0_i32_0 : i32, i32
  }
  func.func @transform_2(%arg0: i32) -> (i32, i32) {
    %c0_i32 = arith.constant 0 : i32
    %c0_i32_0 = arith.constant 0 : i32
    %c0_i32_1 = arith.constant 0 : i32
    return %c0_i32, %c0_i32_0 : i32, i32
  }
  func.func @transform_3(%arg0: i32) -> (i32, i32) {
    %c0_i32 = arith.constant 0 : i32
    %c0_i32_0 = arith.constant 0 : i32
    %c0_i32_1 = arith.constant 0 : i32
    return %c0_i32, %c0_i32_0 : i32, i32
  }
  func.func @transform_4(%arg0: i32) -> (i32, i32) {
    %c0_i32 = arith.constant 0 : i32
    %c0_i32_0 = arith.constant 0 : i32
    %c0_i32_1 = arith.constant 0 : i32
    return %c0_i32, %c0_i32_0 : i32, i32
  }
  func.func @transform_5(%arg0: i32) -> (i32, i32) {
    %c0_i32 = arith.constant 0 : i32
    %c0_i32_0 = arith.constant 0 : i32
    %c0_i32_1 = arith.constant 0 : i32
    return %c0_i32, %c0_i32_0 : i32, i32
  }
  func.func @transform_6(%arg0: i32) -> (i32, i32) {
    %c0_i32 = arith.constant 0 : i32
    %c0_i32_0 = arith.constant 0 : i32
    %c0_i32_1 = arith.constant 0 : i32
    return %c0_i32, %c0_i32_0 : i32, i32
  }
  func.func @transform_7(%arg0: i32) -> (i32, i32) {
    %c0_i32 = arith.constant 0 : i32
    %c0_i32_0 = arith.constant 0 : i32
    return %arg0, %c0_i32 : i32, i32
  }
}

module attributes {stable_mosaic.version = 11 : i64} {
  func.func @_fused_mlp_kernel(%arg0: i32, %arg1: memref<8x256xbf16, #tpu.memory_space<vmem>>, %arg2: memref<256x128xbf16, #tpu.memory_space<vmem>>, %arg3: memref<1x128xf32, #tpu.memory_space<vmem>>, %arg4: memref<128x128xbf16, #tpu.memory_space<vmem>>, %arg5: memref<1x128xf32, #tpu.memory_space<vmem>>, %arg6: memref<128x128xbf16, #tpu.memory_space<vmem>>, %arg7: memref<1x128xf32, #tpu.memory_space<vmem>>, %arg8: memref<8x128xf32, #tpu.memory_space<vmem>>) attributes {dimension_semantics = [#tpu.dimension_semantics<parallel>], iteration_bounds = array<i64: 3>, scalar_prefetch = 0 : i64, scratch_operands = 0 : i64, tpu.core_type = #tpu.core_type<tc>, window_params = [{transform_indices = @transform_0, window_bounds = array<i64: 8, 256>}, {pipeline_mode = #tpu.pipeline_mode<synchronous>, transform_indices = @transform_1, window_bounds = array<i64: 256, 128>}, {pipeline_mode = #tpu.pipeline_mode<synchronous>, transform_indices = @transform_2, window_bounds = array<i64: 1, 128>}, {pipeline_mode = #tpu.pipeline_mode<synchronous>, transform_indices = @transform_3, window_bounds = array<i64: 128, 128>}, {pipeline_mode = #tpu.pipeline_mode<synchronous>, transform_indices = @transform_4, window_bounds = array<i64: 1, 128>}, {pipeline_mode = #tpu.pipeline_mode<synchronous>, transform_indices = @transform_5, window_bounds = array<i64: 128, 128>}, {pipeline_mode = #tpu.pipeline_mode<synchronous>, transform_indices = @transform_6, window_bounds = array<i64: 1, 128>}, {transform_indices = @transform_7, window_bounds = array<i64: 8, 128>}]} {
    %c0 = arith.constant 0 : index
    %c0_0 = arith.constant 0 : index
    %0 = vector.load %arg1[%c0, %c0_0] : memref<8x256xbf16, #tpu.memory_space<vmem>>, vector<8x256xbf16>
    %c0_1 = arith.constant 0 : index
    %c0_2 = arith.constant 0 : index
    %1 = vector.load %arg2[%c0_1, %c0_2] : memref<256x128xbf16, #tpu.memory_space<vmem>>, vector<256x128xbf16>
    %cst = arith.constant dense<0.000000e+00> : vector<8x128xf32>
    %2 = tpu.matmul %0, %1, %cst {dimension_numbers = #tpu.dot_dimension_numbers<[1], [0], [0], [1], [0, 0, 1, 1], [], []>} : vector<8x256xbf16>, vector<256x128xbf16>, vector<8x128xf32> -> vector<8x128xf32>
    %3 = arith.extf %0 : vector<8x256xbf16> to vector<8x256xf32>
    %4 = arith.mulf %3, %3 : vector<8x256xf32>
    %cst_3 = arith.constant dense<0.000000e+00> : vector<8xf32>
    %5 = vector.multi_reduction <add>, %4, %cst_3 [1] : vector<8x256xf32> to vector<8xf32>
    %6 = vector.shape_cast %5 : vector<8xf32> to vector<8x1xf32>
    %cst_4 = arith.constant 1.000000e-24 : f32
    %7 = vector.broadcast %cst_4 : f32 to vector<8x1xf32>
    %8 = arith.maximumf %6, %7 : vector<8x1xf32>
    %9 = math.rsqrt %8 : vector<8x1xf32>
    %10 = vector.broadcast %9 : vector<8x1xf32> to vector<8x128xf32>
    %11 = arith.mulf %2, %10 : vector<8x128xf32>
    %c0_5 = arith.constant 0 : index
    %c0_6 = arith.constant 0 : index
    %12 = vector.load %arg3[%c0_5, %c0_6] : memref<1x128xf32, #tpu.memory_space<vmem>>, vector<1x128xf32>
    %13 = vector.broadcast %12 : vector<1x128xf32> to vector<8x128xf32>
    %14 = arith.addf %11, %13 : vector<8x128xf32>
    %cst_7 = arith.constant 0.000000e+00 : f32
    %15 = vector.broadcast %cst_7 : f32 to vector<8x128xf32>
    %16 = arith.cmpf ogt, %14, %15 : vector<8x128xf32>
    %cst_8 = arith.constant 0.00999999977 : f32
    %17 = vector.broadcast %cst_8 : f32 to vector<8x128xf32>
    %18 = arith.mulf %17, %14 : vector<8x128xf32>
    %19 = arith.select %16, %14, %18 : vector<8x128xi1>, vector<8x128xf32>
    %20 = arith.truncf %19 : vector<8x128xf32> to vector<8x128xbf16>
    %c0_9 = arith.constant 0 : index
    %c0_10 = arith.constant 0 : index
    %21 = vector.load %arg4[%c0_9, %c0_10] : memref<128x128xbf16, #tpu.memory_space<vmem>>, vector<128x128xbf16>
    %cst_11 = arith.constant dense<0.000000e+00> : vector<8x128xf32>
    %22 = tpu.matmul %20, %21, %cst_11 {dimension_numbers = #tpu.dot_dimension_numbers<[1], [0], [0], [1], [0, 0, 1, 1], [], []>} : vector<8x128xbf16>, vector<128x128xbf16>, vector<8x128xf32> -> vector<8x128xf32>
    %c0_12 = arith.constant 0 : index
    %c0_13 = arith.constant 0 : index
    %23 = vector.load %arg5[%c0_12, %c0_13] : memref<1x128xf32, #tpu.memory_space<vmem>>, vector<1x128xf32>
    %24 = vector.broadcast %23 : vector<1x128xf32> to vector<8x128xf32>
    %25 = arith.addf %22, %24 : vector<8x128xf32>
    %cst_14 = arith.constant 0.000000e+00 : f32
    %26 = vector.broadcast %cst_14 : f32 to vector<8x128xf32>
    %27 = arith.cmpf ogt, %25, %26 : vector<8x128xf32>
    %cst_15 = arith.constant 0.00999999977 : f32
    %28 = vector.broadcast %cst_15 : f32 to vector<8x128xf32>
    %29 = arith.mulf %28, %25 : vector<8x128xf32>
    %30 = arith.select %27, %25, %29 : vector<8x128xi1>, vector<8x128xf32>
    %31 = arith.truncf %30 : vector<8x128xf32> to vector<8x128xbf16>
    %c0_16 = arith.constant 0 : index
    %c0_17 = arith.constant 0 : index
    %32 = vector.load %arg6[%c0_16, %c0_17] : memref<128x128xbf16, #tpu.memory_space<vmem>>, vector<128x128xbf16>
    %cst_18 = arith.constant dense<0.000000e+00> : vector<8x128xf32>
    %33 = tpu.matmul %31, %32, %cst_18 {dimension_numbers = #tpu.dot_dimension_numbers<[1], [0], [0], [1], [0, 0, 1, 1], [], []>} : vector<8x128xbf16>, vector<128x128xbf16>, vector<8x128xf32> -> vector<8x128xf32>
    %c0_19 = arith.constant 0 : index
    %c0_20 = arith.constant 0 : index
    %34 = vector.load %arg7[%c0_19, %c0_20] : memref<1x128xf32, #tpu.memory_space<vmem>>, vector<1x128xf32>
    %35 = vector.broadcast %34 : vector<1x128xf32> to vector<8x128xf32>
    %36 = arith.addf %33, %35 : vector<8x128xf32>
    %c0_21 = arith.constant 0 : index
    %c0_22 = arith.constant 0 : index
    %37 = vector.load %arg8[%c0_21, %c0_22] : memref<8x128xf32, #tpu.memory_space<vmem>>, vector<8x128xf32>
    tpu.vector_store %arg8[%c0_21, %c0_22], %36 {strides = array<i32>} : memref<8x128xf32, #tpu.memory_space<vmem>>, vector<8x128xf32>,
    return
  }
  func.func @transform_0(%arg0: i32) -> (i32, i32) {
    %c0_i32 = arith.constant 0 : i32
    %c0_i32_0 = arith.constant 0 : i32
    return %arg0, %c0_i32 : i32, i32
  }
  func.func @transform_1(%arg0: i32) -> (i32, i32) {
    %c0_i32 = arith.constant 0 : i32
    %c0_i32_0 = arith.constant 0 : i32
    %c0_i32_1 = arith.constant 0 : i32
    return %c0_i32, %c0_i32_0 : i32, i32
  }
  func.func @transform_2(%arg0: i32) -> (i32, i32) {
    %c0_i32 = arith.constant 0 : i32
    %c0_i32_0 = arith.constant 0 : i32
    %c0_i32_1 = arith.constant 0 : i32
    return %c0_i32, %c0_i32_0 : i32, i32
  }
  func.func @transform_3(%arg0: i32) -> (i32, i32) {
    %c0_i32 = arith.constant 0 : i32
    %c0_i32_0 = arith.constant 0 : i32
    %c0_i32_1 = arith.constant 0 : i32
    return %c0_i32, %c0_i32_0 : i32, i32
  }
  func.func @transform_4(%arg0: i32) -> (i32, i32) {
    %c0_i32 = arith.constant 0 : i32
    %c0_i32_0 = arith.constant 0 : i32
    %c0_i32_1 = arith.constant 0 : i32
    return %c0_i32, %c0_i32_0 : i32, i32
  }
  func.func @transform_5(%arg0: i32) -> (i32, i32) {
    %c0_i32 = arith.constant 0 : i32
    %c0_i32_0 = arith.constant 0 : i32
    %c0_i32_1 = arith.constant 0 : i32
    return %c0_i32, %c0_i32_0 : i32, i32
  }
  func.func @transform_6(%arg0: i32) -> (i32, i32) {
    %c0_i32 = arith.constant 0 : i32
    %c0_i32_0 = arith.constant 0 : i32
    %c0_i32_1 = arith.constant 0 : i32
    return %c0_i32, %c0_i32_0 : i32, i32
  }
  func.func @transform_7(%arg0: i32) -> (i32, i32) {
    %c0_i32 = arith.constant 0 : i32
    %c0_i32_0 = arith.constant 0 : i32
    return %arg0, %c0_i32 : i32, i32
  }
}

</mosaic_0001>

<llo_original>
// kernel: tpu_custom_call.1
$region0: #{tpu_custom_call.1}
  #allocation0 [shape = 'u32[]', space=smem, size = 0x4, offset = 0x4, fixed_abs, tag = 'smem constant byte address 0x4 - core index']
  #allocation1 [shape = 'u32[144,128]{1,0:T(1,128)}', space=vmem, size = 0x12000, scoped, tag = 'internal scratch']
  %s0 = inlined_call_operand.hbm [shape: bf16[24,256], index: 0, kind: input, shape index: {}]
  %s1 = inlined_call_operand.hbm [shape: bf16[256,128], index: 1, kind: input, shape index: {}]
  %s2 = inlined_call_operand.vmem [shape: f32[1,128], index: 2, kind: input, shape index: {}]
  %s3 = inlined_call_operand.hbm [shape: bf16[128,128], index: 3, kind: input, shape index: {}]
  %s4 = inlined_call_operand.vmem [shape: f32[1,128], index: 4, kind: input, shape index: {}]
  %s5 = inlined_call_operand.hbm [shape: bf16[128,128], index: 5, kind: input, shape index: {}]
  %s6 = inlined_call_operand.vmem [shape: f32[1,128], index: 6, kind: input, shape index: {}]
  %s7 = inlined_call_operand.hbm [shape: f32[24,128], index: 7, kind: output, shape index: {}]
  %s8 = sld [smem:[#allocation0]]
  $region77: #{tpu_custom_call.1} parent=0
    _
  %s10 = ssub.s32 1, %s8
  %s11 = scalar_select 0, %s10, %s8
  $region1: #{tpu_custom_call.1} parent=0
    #allocation2 [shape = 'u8[8192]{0}', space=vmem, size = 0x2000, scoped, tag = 'input window, operand 0']
    #allocation3 [shape = 's32[2]{0}', space=sflag, size = 0x8, scoped, tag = 'scoped memory for tpu_custom_call.1']
    #allocation4 [shape = 's32[2]{0}', space=sflag, size = 0x8, scoped, tag = 'scoped memory for tpu_custom_call.1']
    #allocation5 [shape = 'u8[65536]{0}', space=vmem, size = 0x10000, scoped, tag = 'input window, operand 1, single buffered']
    #allocation6 [shape = 's32[1]{0}', space=sflag, size = 0x4, scoped, tag = 'scoped memory for tpu_custom_call.1']
    #allocation7 [shape = 'u8[32768]{0}', space=vmem, size = 0x8000, scoped, tag = 'input window, operand 3, single buffered']
    #allocation8 [shape = 'u8[32768]{0}', space=vmem, size = 0x8000, scoped, tag = 'input window, operand 5, single buffered']
    #allocation9 [shape = 's32[1]{0}', space=sflag, size = 0x4, scoped, tag = 'scoped memory for tpu_custom_call.1']
    #allocation10 [shape = 'u8[8192]{0}', space=vmem, size = 0x2000, scoped, tag = 'output window, operand 0']
    %12 = vsyncpa [#allocation3], 0
    %s13 = scalar_lea.sflag [#allocation3], 1
    %14 = vsyncpa %s13, 0
    %15 = vsyncpa [#allocation6], 0
    %16 = vsyncpa [#allocation9], 0
    %17 = vsyncpa [#allocation4], 0
    %s18 = scalar_lea.sflag [#allocation4], 1
    %19 = vsyncpa %s18, 0
    loop: start=0, step=1, limit=5
    $region2: #{tpu_custom_call.1} parent=1 // loop_pre_header
      _
    $region3: #{tpu_custom_call.1} parent=1 // loop_header
      %s21 = sphi 0, %s25
      %p22 = scmp.ge.s32.totalorder %s21, 5
      %s31 = sphi 0, %s33
      %s34 = sphi 0, %s31
      %s35 = sphi 0, %s34
      %s51 = sphi 0, %s35
      %s55 = sphi 0, %s55
      %s57 = sphi 0, %s55
      %s58 = sphi 0, %s57
      %s72 = sphi 0, %s58
      %s76 = sphi 0, %s76
      %s78 = sphi 0, %s76
      %s79 = sphi 0, %s78
      %s93 = sphi 0, %s79
      %s97 = sphi 0, %s97
      %s99 = sphi 0, %s97
      %s100 = sphi 0, %s99
      %s114 = sphi 0, %s100
      %s118 = sphi 0, %s118
      %s120 = sphi 0, %s118
      %s121 = sphi 0, %s120
      %s135 = sphi 0, %s121
      %s139 = sphi 0, %s139
      %s141 = sphi 0, %s139
      %s142 = sphi 0, %s141
      %s156 = sphi 0, %s142
      %s160 = sphi 0, %s160
      %s162 = sphi 0, %s160
      %s163 = sphi 0, %s162
      %s177 = sphi 0, %s163
      %s183 = sphi 0, %s185
      %s186 = sphi 0, %s183
      %s187 = sphi 0, %s186
      %s203 = sphi 0, %s187
    $region4: #{tpu_custom_call.1} parent=1 // loop_header_branch
      %24 = sbr.rel (%p22) target = $region8
    $region5: #{tpu_custom_call.1} parent=1 // loop_body
      %s26 = ssub.s32 %s21, 1
      %s27 = ssub.s32 %s21, 2
      %s28 = sadd.s32 %s21, 1
      %s29 = ssub.s32 %s21, %s28
      %p30 = scmp.eq.s32.totalorder %s29, 0
      %s32 = sadd.s32 %s31, 1
      %s33 = scalar_select %p30, %s31, %s32
      %p36 = pneg %p30
      %p37 = scmp.eq.s32.totalorder %s21, 2
      %p38 = por %p36, %p37
      %p39 = scmp.ne.s32.totalorder %s31, %s34
      %p40 = scmp.eq.s32.totalorder %s21, 0
      %p41 = por %p39, %p40
      %p42 = scmp.ne.s32.totalorder %s31, %s34
      %p43 = scmp.eq.s32.totalorder %s26, 2
      %p44 = por %p42, %p43
      %p45 = scmp.ne.s32.totalorder %s34, %s35
      %p46 = scmp.eq.s32.totalorder %s26, 0
      %p47 = por %p45, %p46
      %p48 = scmp.ne.s32.totalorder %s34, %s35
      %p49 = scmp.eq.s32.totalorder %s27, 2
      %p50 = por %p48, %p49
      %p52 = scmp.ne.s32.totalorder %s35, %s51
      %p53 = scmp.eq.s32.totalorder %s27, 0
      %p54 = por %p52, %p53
      %s56 = sadd.s32 %s55, 1
      %p59 = scmp.eq.s32.totalorder %s21, 2
      %p60 = scmp.ne.s32.totalorder %s55, %s57
      %p61 = scmp.eq.s32.totalorder %s21, 0
      %p62 = por %p60, %p61
      %p63 = scmp.ne.s32.totalorder %s55, %s57
      %p64 = scmp.eq.s32.totalorder %s26, 2
      %p65 = por %p63, %p64
      %p66 = scmp.ne.s32.totalorder %s57, %s58
      %p67 = scmp.eq.s32.totalorder %s26, 0
      %p68 = por %p66, %p67
      %p69 = scmp.ne.s32.totalorder %s57, %s58
      %p70 = scmp.eq.s32.totalorder %s27, 2
      %p71 = por %p69, %p70
      %p73 = scmp.ne.s32.totalorder %s58, %s72
      %p74 = scmp.eq.s32.totalorder %s27, 0
      %p75 = por %p73, %p74
      %s77 = sadd.s32 %s76, 1
      %p80 = scmp.eq.s32.totalorder %s21, 2
      %p81 = scmp.ne.s32.totalorder %s76, %s78
      %p82 = scmp.eq.s32.totalorder %s21, 0
      %p83 = por %p81, %p82
      %p84 = scmp.ne.s32.totalorder %s76, %s78
      %p85 = scmp.eq.s32.totalorder %s26, 2
      %p86 = por %p84, %p85
      %p87 = scmp.ne.s32.totalorder %s78, %s79
      %p88 = scmp.eq.s32.totalorder %s26, 0
      %p89 = por %p87, %p88
      %p90 = scmp.ne.s32.totalorder %s78, %s79
      %p91 = scmp.eq.s32.totalorder %s27, 2
      %p92 = por %p90, %p91
      %p94 = scmp.ne.s32.totalorder %s79, %s93
      %p95 = scmp.eq.s32.totalorder %s27, 0
      %p96 = por %p94, %p95
      %s98 = sadd.s32 %s97, 1
      %p101 = scmp.eq.s32.totalorder %s21, 2
      %p102 = scmp.ne.s32.totalorder %s97, %s99
      %p103 = scmp.eq.s32.totalorder %s21, 0
      %p104 = por %p102, %p103
      %p105 = scmp.ne.s32.totalorder %s97, %s99
      %p106 = scmp.eq.s32.totalorder %s26, 2
      %p107 = por %p105, %p106
      %p108 = scmp.ne.s32.totalorder %s99, %s100
      %p109 = scmp.eq.s32.totalorder %s26, 0
      %p110 = por %p108, %p109
      %p111 = scmp.ne.s32.totalorder %s99, %s100
      %p112 = scmp.eq.s32.totalorder %s27, 2
      %p113 = por %p111, %p112
      %p115 = scmp.ne.s32.totalorder %s100, %s114
      %p116 = scmp.eq.s32.totalorder %s27, 0
      %p117 = por %p115, %p116
      %s119 = sadd.s32 %s118, 1
      %p122 = scmp.eq.s32.totalorder %s21, 2
      %p123 = scmp.ne.s32.totalorder %s118, %s120
      %p124 = scmp.eq.s32.totalorder %s21, 0
      %p125 = por %p123, %p124
      %p126 = scmp.ne.s32.totalorder %s118, %s120
      %p127 = scmp.eq.s32.totalorder %s26, 2
      %p128 = por %p126, %p127
      %p129 = scmp.ne.s32.totalorder %s120, %s121
      %p130 = scmp.eq.s32.totalorder %s26, 0
      %p131 = por %p129, %p130
      %p132 = scmp.ne.s32.totalorder %s120, %s121
      %p133 = scmp.eq.s32.totalorder %s27, 2
      %p134 = por %p132, %p133
      %p136 = scmp.ne.s32.totalorder %s121, %s135
      %p137 = scmp.eq.s32.totalorder %s27, 0
      %p138 = por %p136, %p137
      %s140 = sadd.s32 %s139, 1
      %p143 = scmp.eq.s32.totalorder %s21, 2
      %p144 = scmp.ne.s32.totalorder %s139, %s141
      %p145 = scmp.eq.s32.totalorder %s21, 0
      %p146 = por %p144, %p145
      %p147 = scmp.ne.s32.totalorder %s139, %s141
      %p148 = scmp.eq.s32.totalorder %s26, 2
      %p149 = por %p147, %p148
      %p150 = scmp.ne.s32.totalorder %s141, %s142
      %p151 = scmp.eq.s32.totalorder %s26, 0
      %p152 = por %p150, %p151
      %p153 = scmp.ne.s32.totalorder %s141, %s142
      %p154 = scmp.eq.s32.totalorder %s27, 2
      %p155 = por %p153, %p154
      %p157 = scmp.ne.s32.totalorder %s142, %s156
      %p158 = scmp.eq.s32.totalorder %s27, 0
      %p159 = por %p157, %p158
      %s161 = sadd.s32 %s160, 1
      %p164 = scmp.eq.s32.totalorder %s21, 2
      %p165 = scmp.ne.s32.totalorder %s160, %s162
      %p166 = scmp.eq.s32.totalorder %s21, 0
      %p167 = por %p165, %p166
      %p168 = scmp.ne.s32.totalorder %s160, %s162
      %p169 = scmp.eq.s32.totalorder %s26, 2
      %p170 = por %p168, %p169
      %p171 = scmp.ne.s32.totalorder %s162, %s163
      %p172 = scmp.eq.s32.totalorder %s26, 0
      %p173 = por %p171, %p172
      %p174 = scmp.ne.s32.totalorder %s162, %s163
      %p175 = scmp.eq.s32.totalorder %s27, 2
      %p176 = por %p174, %p175
      %p178 = scmp.ne.s32.totalorder %s163, %s177
      %p179 = scmp.eq.s32.totalorder %s27, 0
      %p180 = por %p178, %p179
      %s181 = ssub.s32 %s21, %s28
      %p182 = scmp.eq.s32.totalorder %s181, 0
      %s184 = sadd.s32 %s183, 1
      %s185 = scalar_select %p182, %s183, %s184
      %p188 = pneg %p182
      %p189 = scmp.eq.s32.totalorder %s21, 2
      %p190 = por %p188, %p189
      %p191 = scmp.ne.s32.totalorder %s183, %s186
      %p192 = scmp.eq.s32.totalorder %s21, 0
      %p193 = por %p191, %p192
      %p194 = scmp.ne.s32.totalorder %s183, %s186
      %p195 = scmp.eq.s32.totalorder %s26, 2
      %p196 = por %p194, %p195
      %p197 = scmp.ne.s32.totalorder %s186, %s187
      %p198 = scmp.eq.s32.totalorder %s26, 0
      %p199 = por %p197, %p198
      %p200 = scmp.ne.s32.totalorder %s186, %s187
      %p201 = scmp.eq.s32.totalorder %s27, 2
      %p202 = por %p200, %p201
      %p204 = scmp.ne.s32.totalorder %s187, %s203
      %p205 = scmp.eq.s32.totalorder %s27, 0
      %p206 = por %p204, %p205
      %p207 = scmp.le.s32.totalorder 1, %s21
      %p208 = scmp.lt.s32.totalorder %s21, 4
      %p209 = pnand %p207, %p208
      %p210 = pneg %p209
      // Predicated region
      $region9: #{tpu_custom_call.1} parent=5 // pred_check
        _
      $region10: #{tpu_custom_call.1} parent=5 // pred_check_branch
        %212 = sbr.rel (%p209) target = $region12
      $region11: #{tpu_custom_call.1} parent=5 // pred_region
        %s213 = ssub.s32 %s21, 1
        // Predicated region
        $region13: #{tpu_custom_call.1} parent=11 // pred_check
          %p214 = pneg %p68
        $region14: #{tpu_custom_call.1} parent=11 // pred_check_branch
          %216 = sbr.rel (%p214) target = $region16
        $region15: #{tpu_custom_call.1} parent=11 // pred_region
          %s218 = ssub.s32 2048, 2048
          %219 = vsyncadd [#allocation6], %s218
          %s220 = sshll.u32 [#allocation5], 4
          %s221 = int_to_ptr.vmem [resolvable:$true] %s220
          %226 = dma.hbm_to_vmem [thread:$0]  %s1, 2048, %s221, [#allocation6], 64, 64, 4
        $region16: #{tpu_custom_call.1} parent=11 // pred_fallthru
          _
        // Predicated region
        $region17: #{tpu_custom_call.1} parent=11 // pred_check
          %p227 = pneg %p89
        $region18: #{tpu_custom_call.1} parent=11 // pred_check_branch
          %229 = sbr.rel (%p227) target = $region20
        $region19: #{tpu_custom_call.1} parent=11 // pred_region
          _
        $region20: #{tpu_custom_call.1} parent=11 // pred_fallthru
          _
        // Predicated region
        $region21: #{tpu_custom_call.1} parent=11 // pred_check
          %p230 = pneg %p110
        $region22: #{tpu_custom_call.1} parent=11 // pred_check_branch
          %232 = sbr.rel (%p230) target = $region24
        $region23: #{tpu_custom_call.1} parent=11 // pred_region
          %s234 = ssub.s32 1024, 1024
          %235 = vsyncadd [#allocation6], %s234
          %s236 = sshll.u32 [#allocation7], 4
          %s237 = int_to_ptr.vmem [resolvable:$true] %s236
          %242 = dma.hbm_to_vmem [thread:$0]  %s3, 1024, %s237, [#allocation6], 64, 64, 4
        $region24: #{tpu_custom_call.1} parent=11 // pred_fallthru
          _
        // Predicated region
        $region25: #{tpu_custom_call.1} parent=11 // pred_check
          %p243 = pneg %p131
        $region26: #{tpu_custom_call.1} parent=11 // pred_check_branch
          %245 = sbr.rel (%p243) target = $region28
        $region27: #{tpu_custom_call.1} parent=11 // pred_region
          _
        $region28: #{tpu_custom_call.1} parent=11 // pred_fallthru
          _
        // Predicated region
        $region29: #{tpu_custom_call.1} parent=11 // pred_check
          %p246 = pneg %p152
        $region30: #{tpu_custom_call.1} parent=11 // pred_check_branch
          %248 = sbr.rel (%p246) target = $region32
        $region31: #{tpu_custom_call.1} parent=11 // pred_region
          %s250 = ssub.s32 1024, 1024
          %251 = vsyncadd [#allocation9], %s250
          %s252 = sshll.u32 [#allocation8], 4
          %s253 = int_to_ptr.vmem [resolvable:$true] %s252
          %258 = dma.hbm_to_vmem [thread:$0]  %s5, 1024, %s253, [#allocation9], 64, 64, 4
        $region32: #{tpu_custom_call.1} parent=11 // pred_fallthru
          _
        // Predicated region
        $region33: #{tpu_custom_call.1} parent=11 // pred_check
          %p259 = pneg %p173
        $region34: #{tpu_custom_call.1} parent=11 // pred_check_branch
          %261 = sbr.rel (%p259) target = $region36
        $region35: #{tpu_custom_call.1} parent=11 // pred_region
          _
        $region36: #{tpu_custom_call.1} parent=11 // pred_fallthru
          _
      $region12: #{tpu_custom_call.1} parent=5 // pred_fallthru
        _
      %p262 = scmp.lt.s32.totalorder %s21, 3
      // Predicated region
      $region37: #{tpu_custom_call.1} parent=5 // pred_check
        %p263 = pneg %p262
      $region38: #{tpu_custom_call.1} parent=5 // pred_check_branch
        %265 = sbr.rel (%p263) target = $region40
      $region39: #{tpu_custom_call.1} parent=5 // pred_region
        // Predicated region
        $region41: #{tpu_custom_call.1} parent=39 // pred_check
          %p266 = pneg %p41
        $region42: #{tpu_custom_call.1} parent=39 // pred_check_branch
          %268 = sbr.rel (%p266) target = $region44
        $region43: #{tpu_custom_call.1} parent=39 // pred_region
          %s269 = sand.u32 %s31, 1
          %s270 = scalar_lea.sflag [#allocation3], %s269
          %s271 = sand.u32 %s31, 1
          %s272 = smul.addr %s271, 8
          %s273 = scalar_lea.vmem [#allocation2], %s272
          %s275 = ssub.s32 128, 128
          %276 = vsyncadd %s270, %s275
          %s277 = smul.addr %s21, 2
          %s278 = smul.addr %s277, 64
          %s279 = scalar_lea.hbm %s0, %s278
          %s281 = sshll.u32 %s273, 4
          %s282 = int_to_ptr.vmem [resolvable:$true] %s281
          %284 = dma.hbm_to_vmem [thread:$0]  %s279, 128, %s282, %s270
        $region44: #{tpu_custom_call.1} parent=39 // pred_fallthru
          _
      $region40: #{tpu_custom_call.1} parent=5 // pred_fallthru
        _
      %p285 = scmp.le.s32.totalorder 1, %s21
      %p286 = scmp.lt.s32.totalorder %s21, 4
      %p287 = pnand %p285, %p286
      %p288 = pneg %p287
      // Predicated region
      $region45: #{tpu_custom_call.1} parent=5 // pred_check
        _
      $region46: #{tpu_custom_call.1} parent=5 // pred_check_branch
        %290 = sbr.rel (%p287) target = $region48
      $region47: #{tpu_custom_call.1} parent=5 // pred_region
        %s291 = ssub.s32 %s21, 1
        %s292 = sand.u32 %s34, 1
        %s293 = scalar_lea.sflag [#allocation3], %s292
        %s294 = sand.u32 %s34, 1
        %s295 = smul.addr %s294, 8
        %s296 = scalar_lea.vmem [#allocation2], %s295
        // Predicated region
        $region49: #{tpu_custom_call.1} parent=47 // pred_check
          %p297 = pneg %p47
        $region50: #{tpu_custom_call.1} parent=47 // pred_check_branch
          %299 = sbr.rel (%p297) target = $region52
        $region51: #{tpu_custom_call.1} parent=47 // pred_region
          %300 = dma.done %s293, 128
        $region52: #{tpu_custom_call.1} parent=47 // pred_fallthru
          _
        // Predicated region
        $region53: #{tpu_custom_call.1} parent=47 // pred_check
          %p301 = pneg %p68
        $region54: #{tpu_custom_call.1} parent=47 // pred_check_branch
          %303 = sbr.rel (%p301) target = $region56
        $region55: #{tpu_custom_call.1} parent=47 // pred_region
          %304 = dma.done [#allocation6], 2048
        $region56: #{tpu_custom_call.1} parent=47 // pred_fallthru
          _
        // Predicated region
        $region57: #{tpu_custom_call.1} parent=47 // pred_check
          %p305 = pneg %p110
        $region58: #{tpu_custom_call.1} parent=47 // pred_check_branch
          %307 = sbr.rel (%p305) target = $region60
        $region59: #{tpu_custom_call.1} parent=47 // pred_region
          %308 = dma.done [#allocation6], 1024
        $region60: #{tpu_custom_call.1} parent=47 // pred_fallthru
          _
        // Predicated region
        $region61: #{tpu_custom_call.1} parent=47 // pred_check
          %p309 = pneg %p152
        $region62: #{tpu_custom_call.1} parent=47 // pred_check_branch
          %311 = sbr.rel (%p309) target = $region64
        $region63: #{tpu_custom_call.1} parent=47 // pred_region
          %312 = dma.done [#allocation9], 1024
        $region64: #{tpu_custom_call.1} parent=47 // pred_fallthru
          _
        %s313 = sand.u32 %s34, 1
        %s314 = scalar_lea.sflag [#allocation3], %s313
        %s315 = sand.u32 %s34, 1
        %s316 = smul.addr %s315, 8
        %s317 = scalar_lea.vmem [#allocation2], %s316
        %p318 = pneg %p47
        %p319 = pneg %p44
        %p320 = pneg %p68
        %p321 = pneg %p65
        %p322 = pneg %p89
        %p323 = pneg %p86
        %p324 = pneg %p110
        %p325 = pneg %p107
        %p326 = pneg %p131
        %p327 = pneg %p128
        %p328 = pneg %p152
        %p329 = pneg %p149
        %p330 = pneg %p173
        %p331 = pneg %p170
        %p332 = pneg %p199
        %p333 = pneg %p196
        %s334 = sand.u32 %s186, 1
        %s335 = scalar_lea.sflag [#allocation4], %s334
        %s336 = sand.u32 %s186, 1
        %s337 = smul.addr %s336, 8
        %s338 = scalar_lea.vmem [#allocation10], %s337
        %v340 = vld [vmem:[%s296] sm:$0xff]
        %v341 = vld [vmem:[#allocation5] sm:$0xf]
        %v342 = vld [vmem:[#allocation5 + $0x4] sm:$0xf]
        %v343 = vld [vmem:[#allocation5 + $0x8] sm:$0xf]
        %v344 = vld [vmem:[#allocation5 + $0xc] sm:$0xf]
        %v345 = vld [vmem:[#allocation5 + $0x10] sm:$0xf]
        %v346 = vld [vmem:[#allocation5 + $0x14] sm:$0xf]
        %v347 = vld [vmem:[#allocation5 + $0x18] sm:$0xf]
        %v348 = vld [vmem:[#allocation5 + $0x1c] sm:$0xf]
        %v349 = vld [vmem:[#allocation5 + $0x20] sm:$0xf]
        %v350 = vld [vmem:[#allocation5 + $0x24] sm:$0xf]
        %v351 = vld [vmem:[#allocation5 + $0x28] sm:$0xf]
        %v352 = vld [vmem:[#allocation5 + $0x2c] sm:$0xf]
        %v353 = vld [vmem:[#allocation5 + $0x30] sm:$0xf]
        %v354 = vld [vmem:[#allocation5 + $0x34] sm:$0xf]
        %v355 = vld [vmem:[#allocation5 + $0x38] sm:$0xf]
        %v356 = vld [vmem:[#allocation5 + $0x3c] sm:$0xf]
        %v357 = vld [vmem:[#allocation5 + $0x40] sm:$0xf]
        %v358 = vld [vmem:[#allocation5 + $0x44] sm:$0xf]
        %v359 = vld [vmem:[#allocation5 + $0x48] sm:$0xf]
        %v360 = vld [vmem:[#allocation5 + $0x4c] sm:$0xf]
        %v361 = vld [vmem:[#allocation5 + $0x50] sm:$0xf]
        %v362 = vld [vmem:[#allocation5 + $0x54] sm:$0xf]
        %v363 = vld [vmem:[#allocation5 + $0x58] sm:$0xf]
        %v364 = vld [vmem:[#allocation5 + $0x5c] sm:$0xf]
        %v365 = vld [vmem:[#allocation5 + $0x60] sm:$0xf]
        %v366 = vld [vmem:[#allocation5 + $0x64] sm:$0xf]
        %v367 = vld [vmem:[#allocation5 + $0x68] sm:$0xf]
        %v368 = vld [vmem:[#allocation5 + $0x6c] sm:$0xf]
        %v369 = vld [vmem:[#allocation5 + $0x70] sm:$0xf]
        %v370 = vld [vmem:[#allocation5 + $0x74] sm:$0xf]
        %v371 = vld [vmem:[#allocation5 + $0x78] sm:$0xf]
        %v372 = vld [vmem:[#allocation5 + $0x7c] sm:$0xf]
        %v374 = vunpack.c.l.b16 %v340
        %v375 = vunpack.c.h.b16 %v340
        %v376 = vpack.c.b16 %v374, %v374
        %v377 = vpack.c.b16 %v375, %v375
        %v412 = vunpack.c.l.b16 %v341
        %v413 = vunpack.c.l.b16 %v342
        %v414 = vunpack.c.l.b16 %v343
        %v415 = vunpack.c.l.b16 %v344
        %v416 = vunpack.c.l.b16 %v345
        %v417 = vunpack.c.l.b16 %v346
        %v418 = vunpack.c.l.b16 %v347
        %v419 = vunpack.c.l.b16 %v348
        %v420 = vunpack.c.l.b16 %v349
        %v421 = vunpack.c.l.b16 %v350
        %v422 = vunpack.c.l.b16 %v351
        %v423 = vunpack.c.l.b16 %v352
        %v424 = vunpack.c.l.b16 %v353
        %v425 = vunpack.c.l.b16 %v354
        %v426 = vunpack.c.l.b16 %v355
        %v427 = vunpack.c.l.b16 %v356
        %v428 = vunpack.c.l.b16 %v357
        %v429 = vunpack.c.l.b16 %v358
        %v430 = vunpack.c.l.b16 %v359
        %v431 = vunpack.c.l.b16 %v360
        %v432 = vunpack.c.l.b16 %v361
        %v433 = vunpack.c.l.b16 %v362
        %v434 = vunpack.c.l.b16 %v363
        %v435 = vunpack.c.l.b16 %v364
        %v436 = vunpack.c.l.b16 %v365
        %v437 = vunpack.c.l.b16 %v366
        %v438 = vunpack.c.l.b16 %v367
        %v439 = vunpack.c.l.b16 %v368
        %v440 = vunpack.c.l.b16 %v369
        %v441 = vunpack.c.l.b16 %v370
        %v442 = vunpack.c.l.b16 %v371
        %v443 = vunpack.c.l.b16 %v372
        %v444 = vpack.c.b16 %v413, %v412
        %v445 = vpack.c.b16 %v415, %v414
        %v446 = vpack.c.b16 %v417, %v416
        %v447 = vpack.c.b16 %v419, %v418
        %v448 = vpack.c.b16 %v421, %v420
        %v449 = vpack.c.b16 %v423, %v422
        %v450 = vpack.c.b16 %v425, %v424
        %v451 = vpack.c.b16 %v427, %v426
        %v452 = vpack.c.b16 %v429, %v428
        %v453 = vpack.c.b16 %v431, %v430
        %v454 = vpack.c.b16 %v433, %v432
        %v455 = vpack.c.b16 %v435, %v434
        %v456 = vpack.c.b16 %v437, %v436
        %v457 = vpack.c.b16 %v439, %v438
        %v458 = vpack.c.b16 %v441, %v440
        %v459 = vpack.c.b16 %v443, %v442
        %476 = vmatprep.subr.bf16.mxu0 0
        %477 = vmatpush1.bf16.msra.mxu0 %v444
        %478 = vmatprep.subr.bf16.mxu0 0
        %479 = vmatpush1.bf16.msra.mxu0 %v445
        %480 = vmatprep.subr.bf16.mxu0 0
        %481 = vmatpush1.bf16.msra.mxu0 %v446
        %482 = vmatprep.subr.bf16.mxu0 0
        %483 = vmatpush1.bf16.msra.mxu0 %v447
        %484 = vmatprep.subr.bf16.mxu0 0
        %485 = vmatpush1.bf16.msra.mxu0 %v448
        %486 = vmatprep.subr.bf16.mxu0 0
        %487 = vmatpush1.bf16.msra.mxu0 %v449
        %488 = vmatprep.subr.bf16.mxu0 0
        %489 = vmatpush1.bf16.msra.mxu0 %v450
        %490 = vmatprep.subr.bf16.mxu0 0
        %491 = vmatpush1.bf16.msra.mxu0 %v451
        %492 = vmatprep.subr.bf16.mxu0 0
        %493 = vmatpush1.bf16.msra.mxu0 %v452
        %494 = vmatprep.subr.bf16.mxu0 0
        %495 = vmatpush1.bf16.msra.mxu0 %v453
        %496 = vmatprep.subr.bf16.mxu0 0
        %497 = vmatpush1.bf16.msra.mxu0 %v454
        %498 = vmatprep.subr.bf16.mxu0 0
        %499 = vmatpush1.bf16.msra.mxu0 %v455
        %500 = vmatprep.subr.bf16.mxu0 0
        %501 = vmatpush1.bf16.msra.mxu0 %v456
        %502 = vmatprep.subr.bf16.mxu0 0
        %503 = vmatpush1.bf16.msra.mxu0 %v457
        %504 = vmatprep.subr.bf16.mxu0 0
        %505 = vmatpush1.bf16.msra.mxu0 %v458
        %506 = vmatprep.subr.bf16.mxu0 0
        %507 = vmatpush1.bf16.msra.mxu0 %v459
        %508 = vmatprep.mubr.bf16.mxu0 %v377
        %509 = vmatmul.mubr.bf16.gmra.mrb[0].mxu0 %v376
        %v510 = vpop.f32.mrb[0].mxu0
        %v511 = vadd.f32 0.0, %v510
        %v512 = vpop.f32.mrb[0].mxu0
        %v513 = vpop.f32.mrb[0].mxu0
        %v514 = vpop.f32.mrb[0].mxu0
        %515 = vdwg.mxu0
        %v516 = vunpack.c.l.bf16 %v340
        %v517 = vunpack.c.h.bf16 %v340
        %v518 = vmul.f32 %v516, %v516
        %v519 = vmul.f32 %v517, %v517
        %v520 = vadd.f32 %v518, %v519
        %521 = vadd.xlane.f32.xlu0 %v520
        %v522 = vpop.xlane.xlu0 %521
        %v523 = vmax.f32 %v522, 1e-24
        %v524 = vrsqrt.pop %v523
        %v525 = vmul.f32 %v511, %v524
        %v526 = vld [vmem:[%s2] sm:$0x1]
        %v528 = vlaneseq
        %v529 = vshrl.u32 %v528, 7
        %v530 = vsub.s32 0, %v529
        %v531 = vrot.slane %v526, %v530
        %v533 = vadd.f32 %v525, %v531
        %vm534 = vcmp.gt.f32.partialorder %v533, 0.0
        %v535 = vmul.f32 %v533, 0.01
        %v536 = vsel %vm534, %v533, %v535
        %v537 = vpack.c.bf16 %v536, %v536
        %v538 = vld [vmem:[#allocation7] sm:$0xf]
        %v539 = vld [vmem:[#allocation7 + $0x4] sm:$0xf]
        %v540 = vld [vmem:[#allocation7 + $0x8] sm:$0xf]
        %v541 = vld [vmem:[#allocation7 + $0xc] sm:$0xf]
        %v542 = vld [vmem:[#allocation7 + $0x10] sm:$0xf]
        %v543 = vld [vmem:[#allocation7 + $0x14] sm:$0xf]
        %v544 = vld [vmem:[#allocation7 + $0x18] sm:$0xf]
        %v545 = vld [vmem:[#allocation7 + $0x1c] sm:$0xf]
        %v546 = vld [vmem:[#allocation7 + $0x20] sm:$0xf]
        %v547 = vld [vmem:[#allocation7 + $0x24] sm:$0xf]
        %v548 = vld [vmem:[#allocation7 + $0x28] sm:$0xf]
        %v549 = vld [vmem:[#allocation7 + $0x2c] sm:$0xf]
        %v550 = vld [vmem:[#allocation7 + $0x30] sm:$0xf]
        %v551 = vld [vmem:[#allocation7 + $0x34] sm:$0xf]
        %v552 = vld [vmem:[#allocation7 + $0x38] sm:$0xf]
        %v553 = vld [vmem:[#allocation7 + $0x3c] sm:$0xf]
        %v554 = vld [vmem:[%s4] sm:$0x1]
        %v556 = vlaneseq
        %v557 = vshrl.u32 %v556, 7
        %v558 = vsub.s32 0, %v557
        %v559 = vrot.slane %v554, %v558
        %v577 = vunpack.c.l.b16 %v538
        %v578 = vunpack.c.l.b16 %v539
        %v579 = vunpack.c.l.b16 %v540
        %v580 = vunpack.c.l.b16 %v541
        %v581 = vunpack.c.l.b16 %v542
        %v582 = vunpack.c.l.b16 %v543
        %v583 = vunpack.c.l.b16 %v544
        %v584 = vunpack.c.l.b16 %v545
        %v585 = vunpack.c.l.b16 %v546
        %v586 = vunpack.c.l.b16 %v547
        %v587 = vunpack.c.l.b16 %v548
        %v588 = vunpack.c.l.b16 %v549
        %v589 = vunpack.c.l.b16 %v550
        %v590 = vunpack.c.l.b16 %v551
        %v591 = vunpack.c.l.b16 %v552
        %v592 = vunpack.c.l.b16 %v553
        %v593 = vpack.c.b16 %v578, %v577
        %v594 = vpack.c.b16 %v580, %v579
        %v595 = vpack.c.b16 %v582, %v581
        %v596 = vpack.c.b16 %v584, %v583
        %v597 = vpack.c.b16 %v586, %v585
        %v598 = vpack.c.b16 %v588, %v587
        %v599 = vpack.c.b16 %v590, %v589
        %v600 = vpack.c.b16 %v592, %v591
        %609 = vmatprep.subr.bf16.mxu0 0
        %610 = vmatpush1.bf16.msra.mxu0 %v593
        %611 = vmatprep.subr.bf16.mxu0 0
        %612 = vmatpush1.bf16.msra.mxu0 %v594
        %613 = vmatprep.subr.bf16.mxu0 0
        %614 = vmatpush1.bf16.msra.mxu0 %v595
        %615 = vmatprep.subr.bf16.mxu0 0
        %616 = vmatpush1.bf16.msra.mxu0 %v596
        %617 = vmatprep.subr.bf16.mxu0 0
        %618 = vmatpush1.bf16.msra.mxu0 %v597
        %619 = vmatprep.subr.bf16.mxu0 0
        %620 = vmatpush1.bf16.msra.mxu0 %v598
        %621 = vmatprep.subr.bf16.mxu0 0
        %622 = vmatpush1.bf16.msra.mxu0 %v599
        %623 = vmatprep.subr.bf16.mxu0 0
        %624 = vmatpush1.bf16.msra.mxu0 %v600
        %625 = vmatprep.subr.bf16.mxu0 0
        %626 = vmatpush1.bf16.msra.mxu0 0
        %627 = vmatprep.subr.bf16.mxu0 0
        %628 = vmatpush1.bf16.msra.mxu0 0
        %629 = vmatprep.subr.bf16.mxu0 0
        %630 = vmatpush1.bf16.msra.mxu0 0
        %631 = vmatprep.subr.bf16.mxu0 0
        %632 = vmatpush1.bf16.msra.mxu0 0
        %633 = vmatprep.subr.bf16.mxu0 0
        %634 = vmatpush1.bf16.msra.mxu0 0
        %635 = vmatprep.subr.bf16.mxu0 0
        %636 = vmatpush1.bf16.msra.mxu0 0
        %637 = vmatprep.subr.bf16.mxu0 0
        %638 = vmatpush1.bf16.msra.mxu0 0
        %639 = vmatprep.subr.bf16.mxu0 0
        %640 = vmatpush1.bf16.msra.mxu0 0
        %641 = vmatprep.mubr.bf16.mxu0 0
        %642 = vmatmul.mubr.bf16.gmra.mrb[0].mxu0 %v537
        %v643 = vpop.f32.mrb[0].mxu0
        %v644 = vadd.f32 %v559, %v643
        %v645 = vpop.f32.mrb[0].mxu0
        %v646 = vpop.f32.mrb[0].mxu0
        %v647 = vpop.f32.mrb[0].mxu0
        %648 = vdwg.mxu0
        %vm649 = vcmp.gt.f32.partialorder %v644, 0.0
        %v650 = vmul.f32 %v644, 0.01
        %v651 = vsel %vm649, %v644, %v650
        %v652 = vpack.c.bf16 %v651, %v651
        %v653 = vld [vmem:[#allocation8] sm:$0xf]
        %v654 = vld [vmem:[#allocation8 + $0x4] sm:$0xf]
        %v655 = vld [vmem:[#allocation8 + $0x8] sm:$0xf]
        %v656 = vld [vmem:[#allocation8 + $0xc] sm:$0xf]
        %v657 = vld [vmem:[#allocation8 + $0x10] sm:$0xf]
        %v658 = vld [vmem:[#allocation8 + $0x14] sm:$0xf]
        %v659 = vld [vmem:[#allocation8 + $0x18] sm:$0xf]
        %v660 = vld [vmem:[#allocation8 + $0x1c] sm:$0xf]
        %v661 = vld [vmem:[#allocation8 + $0x20] sm:$0xf]
        %v662 = vld [vmem:[#allocation8 + $0x24] sm:$0xf]
        %v663 = vld [vmem:[#allocation8 + $0x28] sm:$0xf]
        %v664 = vld [vmem:[#allocation8 + $0x2c] sm:$0xf]
        %v665 = vld [vmem:[#allocation8 + $0x30] sm:$0xf]
        %v666 = vld [vmem:[#allocation8 + $0x34] sm:$0xf]
        %v667 = vld [vmem:[#allocation8 + $0x38] sm:$0xf]
        %v668 = vld [vmem:[#allocation8 + $0x3c] sm:$0xf]
        %v669 = vld [vmem:[%s6] sm:$0x1]
        %v671 = vlaneseq
        %v672 = vshrl.u32 %v671, 7
        %v673 = vsub.s32 0, %v672
        %v674 = vrot.slane %v669, %v673
        %v692 = vunpack.c.l.b16 %v653
        %v693 = vunpack.c.l.b16 %v654
        %v694 = vunpack.c.l.b16 %v655
        %v695 = vunpack.c.l.b16 %v656
        %v696 = vunpack.c.l.b16 %v657
        %v697 = vunpack.c.l.b16 %v658
        %v698 = vunpack.c.l.b16 %v659
        %v699 = vunpack.c.l.b16 %v660
        %v700 = vunpack.c.l.b16 %v661
        %v701 = vunpack.c.l.b16 %v662
        %v702 = vunpack.c.l.b16 %v663
        %v703 = vunpack.c.l.b16 %v664
        %v704 = vunpack.c.l.b16 %v665
        %v705 = vunpack.c.l.b16 %v666
        %v706 = vunpack.c.l.b16 %v667
        %v707 = vunpack.c.l.b16 %v668
        %v708 = vpack.c.b16 %v693, %v692
        %v709 = vpack.c.b16 %v695, %v694
        %v710 = vpack.c.b16 %v697, %v696
        %v711 = vpack.c.b16 %v699, %v698
        %v712 = vpack.c.b16 %v701, %v700
        %v713 = vpack.c.b16 %v703, %v702
        %v714 = vpack.c.b16 %v705, %v704
        %v715 = vpack.c.b16 %v707, %v706
        %724 = vmatprep.subr.bf16.mxu0 0
        %725 = vmatpush1.bf16.msra.mxu0 %v708
        %726 = vmatprep.subr.bf16.mxu0 0
        %727 = vmatpush1.bf16.msra.mxu0 %v709
        %728 = vmatprep.subr.bf16.mxu0 0
        %729 = vmatpush1.bf16.msra.mxu0 %v710
        %730 = vmatprep.subr.bf16.mxu0 0
        %731 = vmatpush1.bf16.msra.mxu0 %v711
        %732 = vmatprep.subr.bf16.mxu0 0
        %733 = vmatpush1.bf16.msra.mxu0 %v712
        %734 = vmatprep.subr.bf16.mxu0 0
        %735 = vmatpush1.bf16.msra.mxu0 %v713
        %736 = vmatprep.subr.bf16.mxu0 0
        %737 = vmatpush1.bf16.msra.mxu0 %v714
        %738 = vmatprep.subr.bf16.mxu0 0
        %739 = vmatpush1.bf16.msra.mxu0 %v715
        %740 = vmatprep.subr.bf16.mxu0 0
        %741 = vmatpush1.bf16.msra.mxu0 0
        %742 = vmatprep.subr.bf16.mxu0 0
        %743 = vmatpush1.bf16.msra.mxu0 0
        %744 = vmatprep.subr.bf16.mxu0 0
        %745 = vmatpush1.bf16.msra.mxu0 0
        %746 = vmatprep.subr.bf16.mxu0 0
        %747 = vmatpush1.bf16.msra.mxu0 0
        %748 = vmatprep.subr.bf16.mxu0 0
        %749 = vmatpush1.bf16.msra.mxu0 0
        %750 = vmatprep.subr.bf16.mxu0 0
        %751 = vmatpush1.bf16.msra.mxu0 0
        %752 = vmatprep.subr.bf16.mxu0 0
        %753 = vmatpush1.bf16.msra.mxu0 0
        %754 = vmatprep.subr.bf16.mxu0 0
        %755 = vmatpush1.bf16.msra.mxu0 0
        %756 = vmatprep.mubr.bf16.mxu0 0
        %757 = vmatmul.mubr.bf16.gmra.mrb[0].mxu0 %v652
        %v758 = vpop.f32.mrb[0].mxu0
        %v759 = vadd.f32 %v674, %v758
        %v760 = vpop.f32.mrb[0].mxu0
        %v761 = vpop.f32.mrb[0].mxu0
        %v762 = vpop.f32.mrb[0].mxu0
        %763 = vdwg.mxu0
        %764 = vst [vmem:[%s338] sm:$0xff] %v759
        %s765 = sand.u32 %s186, 1
        %s766 = scalar_lea.sflag [#allocation4], %s765
        %s767 = sand.u32 %s186, 1
        %s768 = smul.addr %s767, 8
        %s769 = scalar_lea.vmem [#allocation10], %s768
        // Predicated region
        $region65: #{tpu_custom_call.1} parent=47 // pred_check
          %p770 = pneg %p196
        $region66: #{tpu_custom_call.1} parent=47 // pred_check_branch
          %772 = sbr.rel (%p770) target = $region68
        $region67: #{tpu_custom_call.1} parent=47 // pred_region
          %s774 = ssub.s32 128, 128
          %775 = vsyncadd %s766, %s774
          %s776 = smul.addr %s26, 128
          %s777 = scalar_lea.hbm %s7, %s776
          %s779 = sshll.u32 %s769, 4
          %s780 = int_to_ptr.vmem [resolvable:$true] %s779
          %782 = dma.vmem_to_hbm [thread:$0]  %s780, 128, %s777, %s766
        $region68: #{tpu_custom_call.1} parent=47 // pred_fallthru
          _
      $region48: #{tpu_custom_call.1} parent=5 // pred_fallthru
        _
      %p783 = scmp.le.s32.totalorder 2, %s21
      // Predicated region
      $region69: #{tpu_custom_call.1} parent=5 // pred_check
        %p784 = pneg %p783
      $region70: #{tpu_custom_call.1} parent=5 // pred_check_branch
        %786 = sbr.rel (%p784) target = $region72
      $region71: #{tpu_custom_call.1} parent=5 // pred_region
        %s787 = ssub.s32 %s21, 2
        // Predicated region
        $region73: #{tpu_custom_call.1} parent=71 // pred_check
          %p788 = pneg %p202
        $region74: #{tpu_custom_call.1} parent=71 // pred_check_branch
          %790 = sbr.rel (%p788) target = $region76
        $region75: #{tpu_custom_call.1} parent=71 // pred_region
          %s791 = sand.u32 %s187, 1
          %s792 = scalar_lea.sflag [#allocation4], %s791
          %s793 = sand.u32 %s187, 1
          %s794 = smul.addr %s793, 8
          %s795 = scalar_lea.vmem [#allocation10], %s794
          %796 = dma.done %s792, 128
        $region76: #{tpu_custom_call.1} parent=71 // pred_fallthru
          _
      $region72: #{tpu_custom_call.1} parent=5 // pred_fallthru
        _
    $region6: #{tpu_custom_call.1} parent=1 // loop_footer
      %s25 = sadd.s32 1, %s21
    $region7: #{tpu_custom_call.1} parent=1 // loop_footer_branch
      %20 = sbr.rel target = $region3
    $region8: #{tpu_custom_call.1} parent=1 // loop_exit
      _
    %797 = vsyncpa [#allocation3], 1
    %s798 = scalar_lea.sflag [#allocation3], 1
    %799 = vsyncpa %s798, 1
    %800 = vsyncpa [#allocation6], 1
    %801 = vsyncpa [#allocation9], 1
    %802 = vsyncpa [#allocation4], 1
    %s803 = scalar_lea.sflag [#allocation4], 1
    %804 = vsyncpa %s803, 1

// kernel: tpu_custom_call.1
$region0: #{tpu_custom_call.1}
  #allocation0 [shape = 'u32[]', space=smem, size = 0x4, offset = 0x4, fixed_abs, tag = 'smem constant byte address 0x4 - core index']
  #allocation1 [shape = 'u32[144,128]{1,0:T(1,128)}', space=vmem, size = 0x12000, scoped, tag = 'internal scratch']
  %s0 = inlined_call_operand.hbm [shape: bf16[24,256], index: 0, kind: input, shape index: {}]
  %s1 = inlined_call_operand.hbm [shape: bf16[256,128], index: 1, kind: input, shape index: {}]
  %s2 = inlined_call_operand.vmem [shape: f32[1,128], index: 2, kind: input, shape index: {}]
  %s3 = inlined_call_operand.hbm [shape: bf16[128,128], index: 3, kind: input, shape index: {}]
  %s4 = inlined_call_operand.vmem [shape: f32[1,128], index: 4, kind: input, shape index: {}]
  %s5 = inlined_call_operand.hbm [shape: bf16[128,128], index: 5, kind: input, shape index: {}]
  %s6 = inlined_call_operand.vmem [shape: f32[1,128], index: 6, kind: input, shape index: {}]
  %s7 = inlined_call_operand.hbm [shape: f32[24,128], index: 7, kind: output, shape index: {}]
  %s8 = sld [smem:[#allocation0]]
  $region77: #{tpu_custom_call.1} parent=0
    _
  %s10 = ssub.s32 1, %s8
  %s11 = scalar_select 0, %s10, %s8
  $region1: #{tpu_custom_call.1} parent=0
    #allocation2 [shape = 'u8[8192]{0}', space=vmem, size = 0x2000, scoped, tag = 'input window, operand 0']
    #allocation3 [shape = 's32[2]{0}', space=sflag, size = 0x8, scoped, tag = 'scoped memory for tpu_custom_call.1']
    #allocation4 [shape = 's32[2]{0}', space=sflag, size = 0x8, scoped, tag = 'scoped memory for tpu_custom_call.1']
    #allocation5 [shape = 'u8[65536]{0}', space=vmem, size = 0x10000, scoped, tag = 'input window, operand 1, single buffered']
    #allocation6 [shape = 's32[1]{0}', space=sflag, size = 0x4, scoped, tag = 'scoped memory for tpu_custom_call.1']
    #allocation7 [shape = 'u8[32768]{0}', space=vmem, size = 0x8000, scoped, tag = 'input window, operand 3, single buffered']
    #allocation8 [shape = 'u8[32768]{0}', space=vmem, size = 0x8000, scoped, tag = 'input window, operand 5, single buffered']
    #allocation9 [shape = 's32[1]{0}', space=sflag, size = 0x4, scoped, tag = 'scoped memory for tpu_custom_call.1']
    #allocation10 [shape = 'u8[8192]{0}', space=vmem, size = 0x2000, scoped, tag = 'output window, operand 0']
    %12 = vsyncpa [#allocation3], 0
    %s13 = scalar_lea.sflag [#allocation3], 1
    %14 = vsyncpa %s13, 0
    %15 = vsyncpa [#allocation6], 0
    %16 = vsyncpa [#allocation9], 0
    %17 = vsyncpa [#allocation4], 0
    %s18 = scalar_lea.sflag [#allocation4], 1
    %19 = vsyncpa %s18, 0
    loop: start=0, step=1, limit=5
    $region2: #{tpu_custom_call.1} parent=1 // loop_pre_header
      _
    $region3: #{tpu_custom_call.1} parent=1 // loop_header
      %s21 = sphi 0, %s25
      %p22 = scmp.ge.s32.totalorder %s21, 5
      %s31 = sphi 0, %s33
      %s34 = sphi 0, %s31
      %s35 = sphi 0, %s34
      %s51 = sphi 0, %s35
      %s55 = sphi 0, %s55
      %s57 = sphi 0, %s55
      %s58 = sphi 0, %s57
      %s72 = sphi 0, %s58
      %s76 = sphi 0, %s76
      %s78 = sphi 0, %s76
      %s79 = sphi 0, %s78
      %s93 = sphi 0, %s79
      %s97 = sphi 0, %s97
      %s99 = sphi 0, %s97
      %s100 = sphi 0, %s99
      %s114 = sphi 0, %s100
      %s118 = sphi 0, %s118
      %s120 = sphi 0, %s118
      %s121 = sphi 0, %s120
      %s135 = sphi 0, %s121
      %s139 = sphi 0, %s139
      %s141 = sphi 0, %s139
      %s142 = sphi 0, %s141
      %s156 = sphi 0, %s142
      %s160 = sphi 0, %s160
      %s162 = sphi 0, %s160
      %s163 = sphi 0, %s162
      %s177 = sphi 0, %s163
      %s183 = sphi 0, %s185
      %s186 = sphi 0, %s183
      %s187 = sphi 0, %s186
      %s203 = sphi 0, %s187
    $region4: #{tpu_custom_call.1} parent=1 // loop_header_branch
      %24 = sbr.rel (%p22) target = $region8
    $region5: #{tpu_custom_call.1} parent=1 // loop_body
      %s26 = ssub.s32 %s21, 1
      %s27 = ssub.s32 %s21, 2
      %s28 = sadd.s32 %s21, 1
      %s29 = ssub.s32 %s21, %s28
      %p30 = scmp.eq.s32.totalorder %s29, 0
      %s32 = sadd.s32 %s31, 1
      %s33 = scalar_select %p30, %s31, %s32
      %p36 = pneg %p30
      %p37 = scmp.eq.s32.totalorder %s21, 2
      %p38 = por %p36, %p37
      %p39 = scmp.ne.s32.totalorder %s31, %s34
      %p40 = scmp.eq.s32.totalorder %s21, 0
      %p41 = por %p39, %p40
      %p42 = scmp.ne.s32.totalorder %s31, %s34
      %p43 = scmp.eq.s32.totalorder %s26, 2
      %p44 = por %p42, %p43
      %p45 = scmp.ne.s32.totalorder %s34, %s35
      %p46 = scmp.eq.s32.totalorder %s26, 0
      %p47 = por %p45, %p46
      %p48 = scmp.ne.s32.totalorder %s34, %s35
      %p49 = scmp.eq.s32.totalorder %s27, 2
      %p50 = por %p48, %p49
      %p52 = scmp.ne.s32.totalorder %s35, %s51
      %p53 = scmp.eq.s32.totalorder %s27, 0
      %p54 = por %p52, %p53
      %s56 = sadd.s32 %s55, 1
      %p59 = scmp.eq.s32.totalorder %s21, 2
      %p60 = scmp.ne.s32.totalorder %s55, %s57
      %p61 = scmp.eq.s32.totalorder %s21, 0
      %p62 = por %p60, %p61
      %p63 = scmp.ne.s32.totalorder %s55, %s57
      %p64 = scmp.eq.s32.totalorder %s26, 2
      %p65 = por %p63, %p64
      %p66 = scmp.ne.s32.totalorder %s57, %s58
      %p67 = scmp.eq.s32.totalorder %s26, 0
      %p68 = por %p66, %p67
      %p69 = scmp.ne.s32.totalorder %s57, %s58
      %p70 = scmp.eq.s32.totalorder %s27, 2
      %p71 = por %p69, %p70
      %p73 = scmp.ne.s32.totalorder %s58, %s72
      %p74 = scmp.eq.s32.totalorder %s27, 0
      %p75 = por %p73, %p74
      %s77 = sadd.s32 %s76, 1
      %p80 = scmp.eq.s32.totalorder %s21, 2
      %p81 = scmp.ne.s32.totalorder %s76, %s78
      %p82 = scmp.eq.s32.totalorder %s21, 0
      %p83 = por %p81, %p82
      %p84 = scmp.ne.s32.totalorder %s76, %s78
      %p85 = scmp.eq.s32.totalorder %s26, 2
      %p86 = por %p84, %p85
      %p87 = scmp.ne.s32.totalorder %s78, %s79
      %p88 = scmp.eq.s32.totalorder %s26, 0
      %p89 = por %p87, %p88
      %p90 = scmp.ne.s32.totalorder %s78, %s79
      %p91 = scmp.eq.s32.totalorder %s27, 2
      %p92 = por %p90, %p91
      %p94 = scmp.ne.s32.totalorder %s79, %s93
      %p95 = scmp.eq.s32.totalorder %s27, 0
      %p96 = por %p94, %p95
      %s98 = sadd.s32 %s97, 1
      %p101 = scmp.eq.s32.totalorder %s21, 2
      %p102 = scmp.ne.s32.totalorder %s97, %s99
      %p103 = scmp.eq.s32.totalorder %s21, 0
      %p104 = por %p102, %p103
      %p105 = scmp.ne.s32.totalorder %s97, %s99
      %p106 = scmp.eq.s32.totalorder %s26, 2
      %p107 = por %p105, %p106
      %p108 = scmp.ne.s32.totalorder %s99, %s100
      %p109 = scmp.eq.s32.totalorder %s26, 0
      %p110 = por %p108, %p109
      %p111 = scmp.ne.s32.totalorder %s99, %s100
      %p112 = scmp.eq.s32.totalorder %s27, 2
      %p113 = por %p111, %p112
      %p115 = scmp.ne.s32.totalorder %s100, %s114
      %p116 = scmp.eq.s32.totalorder %s27, 0
      %p117 = por %p115, %p116
      %s119 = sadd.s32 %s118, 1
      %p122 = scmp.eq.s32.totalorder %s21, 2
      %p123 = scmp.ne.s32.totalorder %s118, %s120
      %p124 = scmp.eq.s32.totalorder %s21, 0
      %p125 = por %p123, %p124
      %p126 = scmp.ne.s32.totalorder %s118, %s120
      %p127 = scmp.eq.s32.totalorder %s26, 2
      %p128 = por %p126, %p127
      %p129 = scmp.ne.s32.totalorder %s120, %s121
      %p130 = scmp.eq.s32.totalorder %s26, 0
      %p131 = por %p129, %p130
      %p132 = scmp.ne.s32.totalorder %s120, %s121
      %p133 = scmp.eq.s32.totalorder %s27, 2
      %p134 = por %p132, %p133
      %p136 = scmp.ne.s32.totalorder %s121, %s135
      %p137 = scmp.eq.s32.totalorder %s27, 0
      %p138 = por %p136, %p137
      %s140 = sadd.s32 %s139, 1
      %p143 = scmp.eq.s32.totalorder %s21, 2
      %p144 = scmp.ne.s32.totalorder %s139, %s141
      %p145 = scmp.eq.s32.totalorder %s21, 0
      %p146 = por %p144, %p145
      %p147 = scmp.ne.s32.totalorder %s139, %s141
      %p148 = scmp.eq.s32.totalorder %s26, 2
      %p149 = por %p147, %p148
      %p150 = scmp.ne.s32.totalorder %s141, %s142
      %p151 = scmp.eq.s32.totalorder %s26, 0
      %p152 = por %p150, %p151
      %p153 = scmp.ne.s32.totalorder %s141, %s142
      %p154 = scmp.eq.s32.totalorder %s27, 2
      %p155 = por %p153, %p154
      %p157 = scmp.ne.s32.totalorder %s142, %s156
      %p158 = scmp.eq.s32.totalorder %s27, 0
      %p159 = por %p157, %p158
      %s161 = sadd.s32 %s160, 1
      %p164 = scmp.eq.s32.totalorder %s21, 2
      %p165 = scmp.ne.s32.totalorder %s160, %s162
      %p166 = scmp.eq.s32.totalorder %s21, 0
      %p167 = por %p165, %p166
      %p168 = scmp.ne.s32.totalorder %s160, %s162
      %p169 = scmp.eq.s32.totalorder %s26, 2
      %p170 = por %p168, %p169
      %p171 = scmp.ne.s32.totalorder %s162, %s163
      %p172 = scmp.eq.s32.totalorder %s26, 0
      %p173 = por %p171, %p172
      %p174 = scmp.ne.s32.totalorder %s162, %s163
      %p175 = scmp.eq.s32.totalorder %s27, 2
      %p176 = por %p174, %p175
      %p178 = scmp.ne.s32.totalorder %s163, %s177
      %p179 = scmp.eq.s32.totalorder %s27, 0
      %p180 = por %p178, %p179
      %s181 = ssub.s32 %s21, %s28
      %p182 = scmp.eq.s32.totalorder %s181, 0
      %s184 = sadd.s32 %s183, 1
      %s185 = scalar_select %p182, %s183, %s184
      %p188 = pneg %p182
      %p189 = scmp.eq.s32.totalorder %s21, 2
      %p190 = por %p188, %p189
      %p191 = scmp.ne.s32.totalorder %s183, %s186
      %p192 = scmp.eq.s32.totalorder %s21, 0
      %p193 = por %p191, %p192
      %p194 = scmp.ne.s32.totalorder %s183, %s186
      %p195 = scmp.eq.s32.totalorder %s26, 2
      %p196 = por %p194, %p195
      %p197 = scmp.ne.s32.totalorder %s186, %s187
      %p198 = scmp.eq.s32.totalorder %s26, 0
      %p199 = por %p197, %p198
      %p200 = scmp.ne.s32.totalorder %s186, %s187
      %p201 = scmp.eq.s32.totalorder %s27, 2
      %p202 = por %p200, %p201
      %p204 = scmp.ne.s32.totalorder %s187, %s203
      %p205 = scmp.eq.s32.totalorder %s27, 0
      %p206 = por %p204, %p205
      %p207 = scmp.le.s32.totalorder 1, %s21
      %p208 = scmp.lt.s32.totalorder %s21, 4
      %p209 = pnand %p207, %p208
      %p210 = pneg %p209
      // Predicated region
      $region9: #{tpu_custom_call.1} parent=5 // pred_check
        _
      $region10: #{tpu_custom_call.1} parent=5 // pred_check_branch
        %212 = sbr.rel (%p209) target = $region12
      $region11: #{tpu_custom_call.1} parent=5 // pred_region
        %s213 = ssub.s32 %s21, 1
        // Predicated region
        $region13: #{tpu_custom_call.1} parent=11 // pred_check
          %p214 = pneg %p68
        $region14: #{tpu_custom_call.1} parent=11 // pred_check_branch
          %216 = sbr.rel (%p214) target = $region16
        $region15: #{tpu_custom_call.1} parent=11 // pred_region
          %s218 = ssub.s32 2048, 2048
          %219 = vsyncadd [#allocation6], %s218
          %s220 = sshll.u32 [#allocation5], 4
          %s221 = int_to_ptr.vmem [resolvable:$true] %s220
          %226 = dma.hbm_to_vmem [thread:$0]  %s1, 2048, %s221, [#allocation6], 64, 64, 4
        $region16: #{tpu_custom_call.1} parent=11 // pred_fallthru
          _
        // Predicated region
        $region17: #{tpu_custom_call.1} parent=11 // pred_check
          %p227 = pneg %p89
        $region18: #{tpu_custom_call.1} parent=11 // pred_check_branch
          %229 = sbr.rel (%p227) target = $region20
        $region19: #{tpu_custom_call.1} parent=11 // pred_region
          _
        $region20: #{tpu_custom_call.1} parent=11 // pred_fallthru
          _
        // Predicated region
        $region21: #{tpu_custom_call.1} parent=11 // pred_check
          %p230 = pneg %p110
        $region22: #{tpu_custom_call.1} parent=11 // pred_check_branch
          %232 = sbr.rel (%p230) target = $region24
        $region23: #{tpu_custom_call.1} parent=11 // pred_region
          %s234 = ssub.s32 1024, 1024
          %235 = vsyncadd [#allocation6], %s234
          %s236 = sshll.u32 [#allocation7], 4
          %s237 = int_to_ptr.vmem [resolvable:$true] %s236
          %242 = dma.hbm_to_vmem [thread:$0]  %s3, 1024, %s237, [#allocation6], 64, 64, 4
        $region24: #{tpu_custom_call.1} parent=11 // pred_fallthru
          _
        // Predicated region
        $region25: #{tpu_custom_call.1} parent=11 // pred_check
          %p243 = pneg %p131
        $region26: #{tpu_custom_call.1} parent=11 // pred_check_branch
          %245 = sbr.rel (%p243) target = $region28
        $region27: #{tpu_custom_call.1} parent=11 // pred_region
          _
        $region28: #{tpu_custom_call.1} parent=11 // pred_fallthru
          _
        // Predicated region
        $region29: #{tpu_custom_call.1} parent=11 // pred_check
          %p246 = pneg %p152
        $region30: #{tpu_custom_call.1} parent=11 // pred_check_branch
          %248 = sbr.rel (%p246) target = $region32
        $region31: #{tpu_custom_call.1} parent=11 // pred_region
          %s250 = ssub.s32 1024, 1024
          %251 = vsyncadd [#allocation9], %s250
          %s252 = sshll.u32 [#allocation8], 4
          %s253 = int_to_ptr.vmem [resolvable:$true] %s252
          %258 = dma.hbm_to_vmem [thread:$0]  %s5, 1024, %s253, [#allocation9], 64, 64, 4
        $region32: #{tpu_custom_call.1} parent=11 // pred_fallthru
          _
        // Predicated region
        $region33: #{tpu_custom_call.1} parent=11 // pred_check
          %p259 = pneg %p173
        $region34: #{tpu_custom_call.1} parent=11 // pred_check_branch
          %261 = sbr.rel (%p259) target = $region36
        $region35: #{tpu_custom_call.1} parent=11 // pred_region
          _
        $region36: #{tpu_custom_call.1} parent=11 // pred_fallthru
          _
      $region12: #{tpu_custom_call.1} parent=5 // pred_fallthru
        _
      %p262 = scmp.lt.s32.totalorder %s21, 3
      // Predicated region
      $region37: #{tpu_custom_call.1} parent=5 // pred_check
        %p263 = pneg %p262
      $region38: #{tpu_custom_call.1} parent=5 // pred_check_branch
        %265 = sbr.rel (%p263) target = $region40
      $region39: #{tpu_custom_call.1} parent=5 // pred_region
        // Predicated region
        $region41: #{tpu_custom_call.1} parent=39 // pred_check
          %p266 = pneg %p41
        $region42: #{tpu_custom_call.1} parent=39 // pred_check_branch
          %268 = sbr.rel (%p266) target = $region44
        $region43: #{tpu_custom_call.1} parent=39 // pred_region
          %s269 = sand.u32 %s31, 1
          %s270 = scalar_lea.sflag [#allocation3], %s269
          %s271 = sand.u32 %s31, 1
          %s272 = smul.addr %s271, 8
          %s273 = scalar_lea.vmem [#allocation2], %s272
          %s275 = ssub.s32 128, 128
          %276 = vsyncadd %s270, %s275
          %s277 = smul.addr %s21, 2
          %s278 = smul.addr %s277, 64
          %s279 = scalar_lea.hbm %s0, %s278
          %s281 = sshll.u32 %s273, 4
          %s282 = int_to_ptr.vmem [resolvable:$true] %s281
          %284 = dma.hbm_to_vmem [thread:$0]  %s279, 128, %s282, %s270
        $region44: #{tpu_custom_call.1} parent=39 // pred_fallthru
          _
      $region40: #{tpu_custom_call.1} parent=5 // pred_fallthru
        _
      %p285 = scmp.le.s32.totalorder 1, %s21
      %p286 = scmp.lt.s32.totalorder %s21, 4
      %p287 = pnand %p285, %p286
      %p288 = pneg %p287
      // Predicated region
      $region45: #{tpu_custom_call.1} parent=5 // pred_check
        _
      $region46: #{tpu_custom_call.1} parent=5 // pred_check_branch
        %290 = sbr.rel (%p287) target = $region48
      $region47: #{tpu_custom_call.1} parent=5 // pred_region
        %s291 = ssub.s32 %s21, 1
        %s292 = sand.u32 %s34, 1
        %s293 = scalar_lea.sflag [#allocation3], %s292
        %s294 = sand.u32 %s34, 1
        %s295 = smul.addr %s294, 8
        %s296 = scalar_lea.vmem [#allocation2], %s295
        // Predicated region
        $region49: #{tpu_custom_call.1} parent=47 // pred_check
          %p297 = pneg %p47
        $region50: #{tpu_custom_call.1} parent=47 // pred_check_branch
          %299 = sbr.rel (%p297) target = $region52
        $region51: #{tpu_custom_call.1} parent=47 // pred_region
          %300 = dma.done %s293, 128
        $region52: #{tpu_custom_call.1} parent=47 // pred_fallthru
          _
        // Predicated region
        $region53: #{tpu_custom_call.1} parent=47 // pred_check
          %p301 = pneg %p68
        $region54: #{tpu_custom_call.1} parent=47 // pred_check_branch
          %303 = sbr.rel (%p301) target = $region56
        $region55: #{tpu_custom_call.1} parent=47 // pred_region
          %304 = dma.done [#allocation6], 2048
        $region56: #{tpu_custom_call.1} parent=47 // pred_fallthru
          _
        // Predicated region
        $region57: #{tpu_custom_call.1} parent=47 // pred_check
          %p305 = pneg %p110
        $region58: #{tpu_custom_call.1} parent=47 // pred_check_branch
          %307 = sbr.rel (%p305) target = $region60
        $region59: #{tpu_custom_call.1} parent=47 // pred_region
          %308 = dma.done [#allocation6], 1024
        $region60: #{tpu_custom_call.1} parent=47 // pred_fallthru
          _
        // Predicated region
        $region61: #{tpu_custom_call.1} parent=47 // pred_check
          %p309 = pneg %p152
        $region62: #{tpu_custom_call.1} parent=47 // pred_check_branch
          %311 = sbr.rel (%p309) target = $region64
        $region63: #{tpu_custom_call.1} parent=47 // pred_region
          %312 = dma.done [#allocation9], 1024
        $region64: #{tpu_custom_call.1} parent=47 // pred_fallthru
          _
        %s313 = sand.u32 %s34, 1
        %s314 = scalar_lea.sflag [#allocation3], %s313
        %s315 = sand.u32 %s34, 1
        %s316 = smul.addr %s315, 8
        %s317 = scalar_lea.vmem [#allocation2], %s316
        %p318 = pneg %p47
        %p319 = pneg %p44
        %p320 = pneg %p68
        %p321 = pneg %p65
        %p322 = pneg %p89
        %p323 = pneg %p86
        %p324 = pneg %p110
        %p325 = pneg %p107
        %p326 = pneg %p131
        %p327 = pneg %p128
        %p328 = pneg %p152
        %p329 = pneg %p149
        %p330 = pneg %p173
        %p331 = pneg %p170
        %p332 = pneg %p199
        %p333 = pneg %p196
        %s334 = sand.u32 %s186, 1
        %s335 = scalar_lea.sflag [#allocation4], %s334
        %s336 = sand.u32 %s186, 1
        %s337 = smul.addr %s336, 8
        %s338 = scalar_lea.vmem [#allocation10], %s337
        %v340 = vld [vmem:[%s296] sm:$0xff]
        %v341 = vld [vmem:[#allocation5] sm:$0xf]
        %v342 = vld [vmem:[#allocation5 + $0x4] sm:$0xf]
        %v343 = vld [vmem:[#allocation5 + $0x8] sm:$0xf]
        %v344 = vld [vmem:[#allocation5 + $0xc] sm:$0xf]
        %v345 = vld [vmem:[#allocation5 + $0x10] sm:$0xf]
        %v346 = vld [vmem:[#allocation5 + $0x14] sm:$0xf]
        %v347 = vld [vmem:[#allocation5 + $0x18] sm:$0xf]
        %v348 = vld [vmem:[#allocation5 + $0x1c] sm:$0xf]
        %v349 = vld [vmem:[#allocation5 + $0x20] sm:$0xf]
        %v350 = vld [vmem:[#allocation5 + $0x24] sm:$0xf]
        %v351 = vld [vmem:[#allocation5 + $0x28] sm:$0xf]
        %v352 = vld [vmem:[#allocation5 + $0x2c] sm:$0xf]
        %v353 = vld [vmem:[#allocation5 + $0x30] sm:$0xf]
        %v354 = vld [vmem:[#allocation5 + $0x34] sm:$0xf]
        %v355 = vld [vmem:[#allocation5 + $0x38] sm:$0xf]
        %v356 = vld [vmem:[#allocation5 + $0x3c] sm:$0xf]
        %v357 = vld [vmem:[#allocation5 + $0x40] sm:$0xf]
        %v358 = vld [vmem:[#allocation5 + $0x44] sm:$0xf]
        %v359 = vld [vmem:[#allocation5 + $0x48] sm:$0xf]
        %v360 = vld [vmem:[#allocation5 + $0x4c] sm:$0xf]
        %v361 = vld [vmem:[#allocation5 + $0x50] sm:$0xf]
        %v362 = vld [vmem:[#allocation5 + $0x54] sm:$0xf]
        %v363 = vld [vmem:[#allocation5 + $0x58] sm:$0xf]
        %v364 = vld [vmem:[#allocation5 + $0x5c] sm:$0xf]
        %v365 = vld [vmem:[#allocation5 + $0x60] sm:$0xf]
        %v366 = vld [vmem:[#allocation5 + $0x64] sm:$0xf]
        %v367 = vld [vmem:[#allocation5 + $0x68] sm:$0xf]
        %v368 = vld [vmem:[#allocation5 + $0x6c] sm:$0xf]
        %v369 = vld [vmem:[#allocation5 + $0x70] sm:$0xf]
        %v370 = vld [vmem:[#allocation5 + $0x74] sm:$0xf]
        %v371 = vld [vmem:[#allocation5 + $0x78] sm:$0xf]
        %v372 = vld [vmem:[#allocation5 + $0x7c] sm:$0xf]
        %v374 = vunpack.c.l.b16 %v340
        %v375 = vunpack.c.h.b16 %v340
        %v376 = vpack.c.b16 %v374, %v374
        %v377 = vpack.c.b16 %v375, %v375
        %v412 = vunpack.c.l.b16 %v341
        %v413 = vunpack.c.l.b16 %v342
        %v414 = vunpack.c.l.b16 %v343
        %v415 = vunpack.c.l.b16 %v344
        %v416 = vunpack.c.l.b16 %v345
        %v417 = vunpack.c.l.b16 %v346
        %v418 = vunpack.c.l.b16 %v347
        %v419 = vunpack.c.l.b16 %v348
        %v420 = vunpack.c.l.b16 %v349
        %v421 = vunpack.c.l.b16 %v350
        %v422 = vunpack.c.l.b16 %v351
        %v423 = vunpack.c.l.b16 %v352
        %v424 = vunpack.c.l.b16 %v353
        %v425 = vunpack.c.l.b16 %v354
        %v426 = vunpack.c.l.b16 %v355
        %v427 = vunpack.c.l.b16 %v356
        %v428 = vunpack.c.l.b16 %v357
        %v429 = vunpack.c.l.b16 %v358
        %v430 = vunpack.c.l.b16 %v359
        %v431 = vunpack.c.l.b16 %v360
        %v432 = vunpack.c.l.b16 %v361
        %v433 = vunpack.c.l.b16 %v362
        %v434 = vunpack.c.l.b16 %v363
        %v435 = vunpack.c.l.b16 %v364
        %v436 = vunpack.c.l.b16 %v365
        %v437 = vunpack.c.l.b16 %v366
        %v438 = vunpack.c.l.b16 %v367
        %v439 = vunpack.c.l.b16 %v368
        %v440 = vunpack.c.l.b16 %v369
        %v441 = vunpack.c.l.b16 %v370
        %v442 = vunpack.c.l.b16 %v371
        %v443 = vunpack.c.l.b16 %v372
        %v444 = vpack.c.b16 %v413, %v412
        %v445 = vpack.c.b16 %v415, %v414
        %v446 = vpack.c.b16 %v417, %v416
        %v447 = vpack.c.b16 %v419, %v418
        %v448 = vpack.c.b16 %v421, %v420
        %v449 = vpack.c.b16 %v423, %v422
        %v450 = vpack.c.b16 %v425, %v424
        %v451 = vpack.c.b16 %v427, %v426
        %v452 = vpack.c.b16 %v429, %v428
        %v453 = vpack.c.b16 %v431, %v430
        %v454 = vpack.c.b16 %v433, %v432
        %v455 = vpack.c.b16 %v435, %v434
        %v456 = vpack.c.b16 %v437, %v436
        %v457 = vpack.c.b16 %v439, %v438
        %v458 = vpack.c.b16 %v441, %v440
        %v459 = vpack.c.b16 %v443, %v442
        %476 = vmatprep.subr.bf16.mxu0 0
        %477 = vmatpush1.bf16.msra.mxu0 %v444
        %478 = vmatprep.subr.bf16.mxu0 0
        %479 = vmatpush1.bf16.msra.mxu0 %v445
        %480 = vmatprep.subr.bf16.mxu0 0
        %481 = vmatpush1.bf16.msra.mxu0 %v446
        %482 = vmatprep.subr.bf16.mxu0 0
        %483 = vmatpush1.bf16.msra.mxu0 %v447
        %484 = vmatprep.subr.bf16.mxu0 0
        %485 = vmatpush1.bf16.msra.mxu0 %v448
        %486 = vmatprep.subr.bf16.mxu0 0
        %487 = vmatpush1.bf16.msra.mxu0 %v449
        %488 = vmatprep.subr.bf16.mxu0 0
        %489 = vmatpush1.bf16.msra.mxu0 %v450
        %490 = vmatprep.subr.bf16.mxu0 0
        %491 = vmatpush1.bf16.msra.mxu0 %v451
        %492 = vmatprep.subr.bf16.mxu0 0
        %493 = vmatpush1.bf16.msra.mxu0 %v452
        %494 = vmatprep.subr.bf16.mxu0 0
        %495 = vmatpush1.bf16.msra.mxu0 %v453
        %496 = vmatprep.subr.bf16.mxu0 0
        %497 = vmatpush1.bf16.msra.mxu0 %v454
        %498 = vmatprep.subr.bf16.mxu0 0
        %499 = vmatpush1.bf16.msra.mxu0 %v455
        %500 = vmatprep.subr.bf16.mxu0 0
        %501 = vmatpush1.bf16.msra.mxu0 %v456
        %502 = vmatprep.subr.bf16.mxu0 0
        %503 = vmatpush1.bf16.msra.mxu0 %v457
        %504 = vmatprep.subr.bf16.mxu0 0
        %505 = vmatpush1.bf16.msra.mxu0 %v458
        %506 = vmatprep.subr.bf16.mxu0 0
        %507 = vmatpush1.bf16.msra.mxu0 %v459
        %508 = vmatprep.mubr.bf16.mxu0 %v377
        %509 = vmatmul.mubr.bf16.gmra.mrb[0].mxu0 %v376
        %v510 = vpop.f32.mrb[0].mxu0
        %v511 = vadd.f32 0.0, %v510
        %v512 = vpop.f32.mrb[0].mxu0
        %v513 = vpop.f32.mrb[0].mxu0
        %v514 = vpop.f32.mrb[0].mxu0
        %515 = vdwg.mxu0
        %v516 = vunpack.c.l.bf16 %v340
        %v517 = vunpack.c.h.bf16 %v340
        %v518 = vmul.f32 %v516, %v516
        %v519 = vmul.f32 %v517, %v517
        %v520 = vadd.f32 %v518, %v519
        %521 = vadd.xlane.f32.xlu0 %v520
        %v522 = vpop.xlane.xlu0 %521
        %v523 = vmax.f32 %v522, 1e-24
        %v524 = vrsqrt.pop %v523
        %v525 = vmul.f32 %v511, %v524
        %v526 = vld [vmem:[%s2] sm:$0x1]
        %v528 = vlaneseq
        %v529 = vshrl.u32 %v528, 7
        %v530 = vsub.s32 0, %v529
        %v531 = vrot.slane %v526, %v530
        %v533 = vadd.f32 %v525, %v531
        %vm534 = vcmp.gt.f32.partialorder %v533, 0.0
        %v535 = vmul.f32 %v533, 0.01
        %v536 = vsel %vm534, %v533, %v535
        %v537 = vpack.c.bf16 %v536, %v536
        %v538 = vld [vmem:[#allocation7] sm:$0xf]
        %v539 = vld [vmem:[#allocation7 + $0x4] sm:$0xf]
        %v540 = vld [vmem:[#allocation7 + $0x8] sm:$0xf]
        %v541 = vld [vmem:[#allocation7 + $0xc] sm:$0xf]
        %v542 = vld [vmem:[#allocation7 + $0x10] sm:$0xf]
        %v543 = vld [vmem:[#allocation7 + $0x14] sm:$0xf]
        %v544 = vld [vmem:[#allocation7 + $0x18] sm:$0xf]
        %v545 = vld [vmem:[#allocation7 + $0x1c] sm:$0xf]
        %v546 = vld [vmem:[#allocation7 + $0x20] sm:$0xf]
        %v547 = vld [vmem:[#allocation7 + $0x24] sm:$0xf]
        %v548 = vld [vmem:[#allocation7 + $0x28] sm:$0xf]
        %v549 = vld [vmem:[#allocation7 + $0x2c] sm:$0xf]
        %v550 = vld [vmem:[#allocation7 + $0x30] sm:$0xf]
        %v551 = vld [vmem:[#allocation7 + $0x34] sm:$0xf]
        %v552 = vld [vmem:[#allocation7 + $0x38] sm:$0xf]
        %v553 = vld [vmem:[#allocation7 + $0x3c] sm:$0xf]
        %v554 = vld [vmem:[%s4] sm:$0x1]
        %v556 = vlaneseq
        %v557 = vshrl.u32 %v556, 7
        %v558 = vsub.s32 0, %v557
        %v559 = vrot.slane %v554, %v558
        %v577 = vunpack.c.l.b16 %v538
        %v578 = vunpack.c.l.b16 %v539
        %v579 = vunpack.c.l.b16 %v540
        %v580 = vunpack.c.l.b16 %v541
        %v581 = vunpack.c.l.b16 %v542
        %v582 = vunpack.c.l.b16 %v543
        %v583 = vunpack.c.l.b16 %v544
        %v584 = vunpack.c.l.b16 %v545
        %v585 = vunpack.c.l.b16 %v546
        %v586 = vunpack.c.l.b16 %v547
        %v587 = vunpack.c.l.b16 %v548
        %v588 = vunpack.c.l.b16 %v549
        %v589 = vunpack.c.l.b16 %v550
        %v590 = vunpack.c.l.b16 %v551
        %v591 = vunpack.c.l.b16 %v552
        %v592 = vunpack.c.l.b16 %v553
        %v593 = vpack.c.b16 %v578, %v577
        %v594 = vpack.c.b16 %v580, %v579
        %v595 = vpack.c.b16 %v582, %v581
        %v596 = vpack.c.b16 %v584, %v583
        %v597 = vpack.c.b16 %v586, %v585
        %v598 = vpack.c.b16 %v588, %v587
        %v599 = vpack.c.b16 %v590, %v589
        %v600 = vpack.c.b16 %v592, %v591
        %609 = vmatprep.subr.bf16.mxu0 0
        %610 = vmatpush1.bf16.msra.mxu0 %v593
        %611 = vmatprep.subr.bf16.mxu0 0
        %612 = vmatpush1.bf16.msra.mxu0 %v594
        %613 = vmatprep.subr.bf16.mxu0 0
        %614 = vmatpush1.bf16.msra.mxu0 %v595
        %615 = vmatprep.subr.bf16.mxu0 0
        %616 = vmatpush1.bf16.msra.mxu0 %v596
        %617 = vmatprep.subr.bf16.mxu0 0
        %618 = vmatpush1.bf16.msra.mxu0 %v597
        %619 = vmatprep.subr.bf16.mxu0 0
        %620 = vmatpush1.bf16.msra.mxu0 %v598
        %621 = vmatprep.subr.bf16.mxu0 0
        %622 = vmatpush1.bf16.msra.mxu0 %v599
        %623 = vmatprep.subr.bf16.mxu0 0
        %624 = vmatpush1.bf16.msra.mxu0 %v600
        %625 = vmatprep.subr.bf16.mxu0 0
        %626 = vmatpush1.bf16.msra.mxu0 0
        %627 = vmatprep.subr.bf16.mxu0 0
        %628 = vmatpush1.bf16.msra.mxu0 0
        %629 = vmatprep.subr.bf16.mxu0 0
        %630 = vmatpush1.bf16.msra.mxu0 0
        %631 = vmatprep.subr.bf16.mxu0 0
        %632 = vmatpush1.bf16.msra.mxu0 0
        %633 = vmatprep.subr.bf16.mxu0 0
        %634 = vmatpush1.bf16.msra.mxu0 0
        %635 = vmatprep.subr.bf16.mxu0 0
        %636 = vmatpush1.bf16.msra.mxu0 0
        %637 = vmatprep.subr.bf16.mxu0 0
        %638 = vmatpush1.bf16.msra.mxu0 0
        %639 = vmatprep.subr.bf16.mxu0 0
        %640 = vmatpush1.bf16.msra.mxu0 0
        %641 = vmatprep.mubr.bf16.mxu0 0
        %642 = vmatmul.mubr.bf16.gmra.mrb[0].mxu0 %v537
        %v643 = vpop.f32.mrb[0].mxu0
        %v644 = vadd.f32 %v559, %v643
        %v645 = vpop.f32.mrb[0].mxu0
        %v646 = vpop.f32.mrb[0].mxu0
        %v647 = vpop.f32.mrb[0].mxu0
        %648 = vdwg.mxu0
        %vm649 = vcmp.gt.f32.partialorder %v644, 0.0
        %v650 = vmul.f32 %v644, 0.01
        %v651 = vsel %vm649, %v644, %v650
        %v652 = vpack.c.bf16 %v651, %v651
        %v653 = vld [vmem:[#allocation8] sm:$0xf]
        %v654 = vld [vmem:[#allocation8 + $0x4] sm:$0xf]
        %v655 = vld [vmem:[#allocation8 + $0x8] sm:$0xf]
        %v656 = vld [vmem:[#allocation8 + $0xc] sm:$0xf]
        %v657 = vld [vmem:[#allocation8 + $0x10] sm:$0xf]
        %v658 = vld [vmem:[#allocation8 + $0x14] sm:$0xf]
        %v659 = vld [vmem:[#allocation8 + $0x18] sm:$0xf]
        %v660 = vld [vmem:[#allocation8 + $0x1c] sm:$0xf]
        %v661 = vld [vmem:[#allocation8 + $0x20] sm:$0xf]
        %v662 = vld [vmem:[#allocation8 + $0x24] sm:$0xf]
        %v663 = vld [vmem:[#allocation8 + $0x28] sm:$0xf]
        %v664 = vld [vmem:[#allocation8 + $0x2c] sm:$0xf]
        %v665 = vld [vmem:[#allocation8 + $0x30] sm:$0xf]
        %v666 = vld [vmem:[#allocation8 + $0x34] sm:$0xf]
        %v667 = vld [vmem:[#allocation8 + $0x38] sm:$0xf]
        %v668 = vld [vmem:[#allocation8 + $0x3c] sm:$0xf]
        %v669 = vld [vmem:[%s6] sm:$0x1]
        %v671 = vlaneseq
        %v672 = vshrl.u32 %v671, 7
        %v673 = vsub.s32 0, %v672
        %v674 = vrot.slane %v669, %v673
        %v692 = vunpack.c.l.b16 %v653
        %v693 = vunpack.c.l.b16 %v654
        %v694 = vunpack.c.l.b16 %v655
        %v695 = vunpack.c.l.b16 %v656
        %v696 = vunpack.c.l.b16 %v657
        %v697 = vunpack.c.l.b16 %v658
        %v698 = vunpack.c.l.b16 %v659
        %v699 = vunpack.c.l.b16 %v660
        %v700 = vunpack.c.l.b16 %v661
        %v701 = vunpack.c.l.b16 %v662
        %v702 = vunpack.c.l.b16 %v663
        %v703 = vunpack.c.l.b16 %v664
        %v704 = vunpack.c.l.b16 %v665
        %v705 = vunpack.c.l.b16 %v666
        %v706 = vunpack.c.l.b16 %v667
        %v707 = vunpack.c.l.b16 %v668
        %v708 = vpack.c.b16 %v693, %v692
        %v709 = vpack.c.b16 %v695, %v694
        %v710 = vpack.c.b16 %v697, %v696
        %v711 = vpack.c.b16 %v699, %v698
        %v712 = vpack.c.b16 %v701, %v700
        %v713 = vpack.c.b16 %v703, %v702
        %v714 = vpack.c.b16 %v705, %v704
        %v715 = vpack.c.b16 %v707, %v706
        %724 = vmatprep.subr.bf16.mxu0 0
        %725 = vmatpush1.bf16.msra.mxu0 %v708
        %726 = vmatprep.subr.bf16.mxu0 0
        %727 = vmatpush1.bf16.msra.mxu0 %v709
        %728 = vmatprep.subr.bf16.mxu0 0
        %729 = vmatpush1.bf16.msra.mxu0 %v710
        %730 = vmatprep.subr.bf16.mxu0 0
        %731 = vmatpush1.bf16.msra.mxu0 %v711
        %732 = vmatprep.subr.bf16.mxu0 0
        %733 = vmatpush1.bf16.msra.mxu0 %v712
        %734 = vmatprep.subr.bf16.mxu0 0
        %735 = vmatpush1.bf16.msra.mxu0 %v713
        %736 = vmatprep.subr.bf16.mxu0 0
        %737 = vmatpush1.bf16.msra.mxu0 %v714
        %738 = vmatprep.subr.bf16.mxu0 0
        %739 = vmatpush1.bf16.msra.mxu0 %v715
        %740 = vmatprep.subr.bf16.mxu0 0
        %741 = vmatpush1.bf16.msra.mxu0 0
        %742 = vmatprep.subr.bf16.mxu0 0
        %743 = vmatpush1.bf16.msra.mxu0 0
        %744 = vmatprep.subr.bf16.mxu0 0
        %745 = vmatpush1.bf16.msra.mxu0 0
        %746 = vmatprep.subr.bf16.mxu0 0
        %747 = vmatpush1.bf16.msra.mxu0 0
        %748 = vmatprep.subr.bf16.mxu0 0
        %749 = vmatpush1.bf16.msra.mxu0 0
        %750 = vmatprep.subr.bf16.mxu0 0
        %751 = vmatpush1.bf16.msra.mxu0 0
        %752 = vmatprep.subr.bf16.mxu0 0
        %753 = vmatpush1.bf16.msra.mxu0 0
        %754 = vmatprep.subr.bf16.mxu0 0
        %755 = vmatpush1.bf16.msra.mxu0 0
        %756 = vmatprep.mubr.bf16.mxu0 0
        %757 = vmatmul.mubr.bf16.gmra.mrb[0].mxu0 %v652
        %v758 = vpop.f32.mrb[0].mxu0
        %v759 = vadd.f32 %v674, %v758
        %v760 = vpop.f32.mrb[0].mxu0
        %v761 = vpop.f32.mrb[0].mxu0
        %v762 = vpop.f32.mrb[0].mxu0
        %763 = vdwg.mxu0
        %764 = vst [vmem:[%s338] sm:$0xff] %v759
        %s765 = sand.u32 %s186, 1
        %s766 = scalar_lea.sflag [#allocation4], %s765
        %s767 = sand.u32 %s186, 1
        %s768 = smul.addr %s767, 8
        %s769 = scalar_lea.vmem [#allocation10], %s768
        // Predicated region
        $region65: #{tpu_custom_call.1} parent=47 // pred_check
          %p770 = pneg %p196
        $region66: #{tpu_custom_call.1} parent=47 // pred_check_branch
          %772 = sbr.rel (%p770) target = $region68
        $region67: #{tpu_custom_call.1} parent=47 // pred_region
          %s774 = ssub.s32 128, 128
          %775 = vsyncadd %s766, %s774
          %s776 = smul.addr %s26, 128
          %s777 = scalar_lea.hbm %s7, %s776
          %s779 = sshll.u32 %s769, 4
          %s780 = int_to_ptr.vmem [resolvable:$true] %s779
          %782 = dma.vmem_to_hbm [thread:$0]  %s780, 128, %s777, %s766
        $region68: #{tpu_custom_call.1} parent=47 // pred_fallthru
          _
      $region48: #{tpu_custom_call.1} parent=5 // pred_fallthru
        _
      %p783 = scmp.le.s32.totalorder 2, %s21
      // Predicated region
      $region69: #{tpu_custom_call.1} parent=5 // pred_check
        %p784 = pneg %p783
      $region70: #{tpu_custom_call.1} parent=5 // pred_check_branch
        %786 = sbr.rel (%p784) target = $region72
      $region71: #{tpu_custom_call.1} parent=5 // pred_region
        %s787 = ssub.s32 %s21, 2
        // Predicated region
        $region73: #{tpu_custom_call.1} parent=71 // pred_check
          %p788 = pneg %p202
        $region74: #{tpu_custom_call.1} parent=71 // pred_check_branch
          %790 = sbr.rel (%p788) target = $region76
        $region75: #{tpu_custom_call.1} parent=71 // pred_region
          %s791 = sand.u32 %s187, 1
          %s792 = scalar_lea.sflag [#allocation4], %s791
          %s793 = sand.u32 %s187, 1
          %s794 = smul.addr %s793, 8
          %s795 = scalar_lea.vmem [#allocation10], %s794
          %796 = dma.done %s792, 128
        $region76: #{tpu_custom_call.1} parent=71 // pred_fallthru
          _
      $region72: #{tpu_custom_call.1} parent=5 // pred_fallthru
        _
    $region6: #{tpu_custom_call.1} parent=1 // loop_footer
      %s25 = sadd.s32 1, %s21
    $region7: #{tpu_custom_call.1} parent=1 // loop_footer_branch
      %20 = sbr.rel target = $region3
    $region8: #{tpu_custom_call.1} parent=1 // loop_exit
      _
    %797 = vsyncpa [#allocation3], 1
    %s798 = scalar_lea.sflag [#allocation3], 1
    %799 = vsyncpa %s798, 1
    %800 = vsyncpa [#allocation6], 1
    %801 = vsyncpa [#allocation9], 1
    %802 = vsyncpa [#allocation4], 1
    %s803 = scalar_lea.sflag [#allocation4], 1
    %804 = vsyncpa %s803, 1

</llo_original>
